<compile_context>
chip_gen: v7x
topology: tpu7x:2x2x1
jax: 0.10.0
libtpu: 0.0.40
codegen_flags: <defaults>
</compile_context>

<pallas_src>
import functools

import jax
import jax.numpy as jnp
from jax.experimental import pallas as pl
from jax.experimental.pallas import tpu as pltpu

ALPHA = 0.2  # LeakyReLU negative slope (module default)


def _round_up(x, m):
    return ((x + m - 1) // m) * m


def _cdiv(a, b):
    return -(-a // b)


def feature_attention_kernel(x_ref, a1_ref, v2_ref, c2_ref, o_ref):
    # x_ref:  (bt, W, K)  block of batch elements, native (window, feature) layout
    # a1_ref: (W, 1)      attn[:W]
    # v2_ref: (W, 1)      Wfc^T @ attn[W:]   (fc layer folded into the score)
    # c2_ref: (1, 1)      bfc . attn[W:]
    x = x_ref[...].astype(jnp.float32)                               # (bt, W, K)

    # Attention logits: e[b, i, j] = leakyrelu( s1[b, i] + s2[b, j] )
    # s1/s2 as VPU multiply + sublane reduction over the window axis (off the MXU).
    s1 = jnp.sum(x * a1_ref[...], axis=1)                            # (bt, K)
    s2 = jnp.sum(x * v2_ref[...], axis=1) + c2_ref[...]              # (bt, K)

    # Closed-form row max (LeakyReLU is monotone increasing):
    #   max_j lrelu(s1_i + s2_j) = lrelu(s1_i + max_j s2_j)
    # -> only a (bt, K) reduce instead of a (bt, K, K) one.
    s2_max = jnp.max(s2, axis=-1, keepdims=True)                     # (bt, 1)
    row_max = s1 + s2_max                                            # (bt, K)
    row_max = jnp.where(row_max > 0, row_max, ALPHA * row_max)       # exact row max of e

    e = s1[:, :, None] + s2[:, None, :]                              # (bt, K, K)
    e = jnp.where(e > 0, e, ALPHA * e)                               # LeakyReLU
    p = jnp.exp(e - row_max[:, :, None])                             # stabilized, EUP
    denom = jnp.sum(p, axis=-1, keepdims=True)                       # (bt, K, 1)
    r = pl.reciprocal(denom, approx=True)                            # EUP slot
    r = r * (2.0 - denom * r)                                        # 1 Newton step -> f32 accurate
    attn = p * r                                                     # softmax rows, (bt, K, K)

    # TODO(synk): torch.dropout on `attention` (training-time RNG dropout) is not
    # reproduced; this kernel implements the eval-mode forward.

    # out[b, w, i] = sum_j attn[b, i, j] * x[b, w, j]  (already native (bt, W, K) layout)
    out = jax.lax.dot_general(
        x, attn,
        dimension_numbers=(((2,), (2,)), ((0,), (0,))),
        preferred_element_type=jnp.float32)                          # (bt, W, K)
    o_ref[...] = jax.nn.sigmoid(out).astype(o_ref.dtype)


def _auto_batch_tile(W, K, x_itemsize, out_itemsize, vmem_budget_bytes):
    """Largest bt whose lane/sublane-PADDED VMEM working set fits the budget."""
    lanes_k = _round_up(K, 128)                       # last dim padded to 128 lanes
    sub_x = 8 * max(1, 4 // x_itemsize)               # sublane pack: 8 (f32) / 16 (bf16)
    sub_o = 8 * max(1, 4 // out_itemsize)
    pad_x = _round_up(W, sub_x) * lanes_k * x_itemsize       # x block, per batch row
    pad_o = _round_up(W, sub_o) * lanes_k * out_itemsize     # out block, per batch row
    pad_f32_wk = _round_up(W, 8) * lanes_k * 4               # f32 x upcast + matmul result
    pad_f32_kk = _round_up(K, 8) * lanes_k * 4               # (K,K) softmax temporaries
    per_b = (2 * pad_x          # double-buffered input block
             + 2 * pad_o        # double-buffered output block
             + 2 * pad_f32_wk   # f32 temporaries scaling with (W, K)
             + 3 * pad_f32_kk)  # e / p / attn
    return max(1, vmem_budget_bytes // per_b)


def feature_attention_forward(x, wfc, bfc, attn_param, *, n_features, window_size,
                              batch_tile=None):
    """x: (B, window_size, n_features) -> (B, window_size, n_features)."""
    B, Wdim, Kdim = x.shape
    K, W = n_features, window_size
    assert (Wdim, Kdim) == (W, K), (x.shape, (W, K))

    attn_param = attn_param.reshape(-1)
    a1 = attn_param[:W].astype(jnp.float32)
    a2 = attn_param[W:].astype(jnp.float32)
    # Fold the fc layer (weight-only, O(W^2), batch independent):
    #   s2 = h . a2 = (x_p @ Wfc^T + bfc) . a2 = x_p . (Wfc^T a2) + bfc . a2
    v2 = jnp.einsum("ow,o->w", wfc.astype(jnp.float32), a2)
    c2 = jnp.dot(bfc.astype(jnp.float32), a2)

    a1c = a1.reshape(W, 1)
    v2c = v2.reshape(W, 1)
    c2c = c2.reshape(1, 1)

    # Per-generation VMEM budget (v5e/v6e: 128 MiB physical, v7x: 64 MiB).
    try:
        vmem_cap = int(pltpu.get_tpu_info().vmem_capacity_bytes)
    except Exception:
        vmem_cap = 64 * 1024 * 1024        # conservative fallback = v7x capacity
    vmem_budget = int(vmem_cap * 0.70)     # headroom for compiler scratch / small params
    vmem_limit = int(vmem_cap * 0.75)      # scoped limit well above the 16/32 MiB default

    itemsize = jnp.dtype(x.dtype).itemsize

    if batch_tile is None:
        bt = _auto_batch_tile(W, K, itemsize, itemsize, vmem_budget)
        bt = min(bt, B)
        if bt >= 8:
            bt = (bt // 8) * 8             # keep (bt, K) tensors on full sublanes
        if B > 8:
            # Give the v7x megacore (2 TCs) at least two blocks, ideally an even count.
            bt = min(bt, max(8, _round_up(_cdiv(B, 2), 8)))
            ng = _cdiv(B, bt)
            if ng > 1 and ng % 2 == 1:
                bt_even = max(8, _round_up(_cdiv(B, ng + 1), 8))
                if _cdiv(B, bt_even) % 2 == 0:
                    bt = bt_even
    else:
        bt = min(int(batch_tile), B)
        if bt >= 8:
            bt = (bt // 8) * 8
    bt = max(1, bt)

    grid = (_cdiv(B, bt),)

    cost = pl.CostEstimate(
        flops=int(2 * B * W * K * K + 6 * B * W * K + 10 * B * K * K),
        transcendentals=int(B * K * K + B * W * K + B * K),
        bytes_accessed=int(2 * B * W * K * itemsize + (2 * W + 1) * 4),
    )

    return pl.pallas_call(
        feature_attention_kernel,
        out_shape=jax.ShapeDtypeStruct((B, W, K), x.dtype),
        grid_spec=pltpu.PrefetchScalarGridSpec(
            num_scalar_prefetch=0,
            grid=grid,
            in_specs=[
                pl.BlockSpec((bt, W, K), lambda b: (b, 0, 0)),   # x, a block of batches
                pl.BlockSpec((W, 1), lambda b: (0, 0)),          # a1 = attn[:W]
                pl.BlockSpec((W, 1), lambda b: (0, 0)),          # v2 = Wfc^T @ attn[W:]
                pl.BlockSpec((1, 1), lambda b: (0, 0)),          # c2 = bfc . attn[W:]
            ],
            out_specs=pl.BlockSpec((bt, W, K), lambda b: (b, 0, 0)),
        ),
        compiler_params=pltpu.CompilerParams(
            dimension_semantics=("parallel",),   # batch blocks are independent (megacore)
            vmem_limit_bytes=vmem_limit,
        ),
        cost_estimate=cost,
    )(x, a1c, v2c, c2c)


def reference_forward(x, wfc, bfc, attn_param, *, n_features, window_size):
    """Pure-JAX mirror of the PyTorch forward (eval mode, no dropout)."""
    K, W = n_features, window_size
    xp = jnp.transpose(x, (0, 2, 1))                                     # (B, K, W)
    h = jnp.einsum("bkw,ow->bko", xp, wfc) + bfc                         # (B, K, W)
    a1, a2 = attn_param[:W], attn_param[W:]
    s1 = jnp.einsum("bkw,w->bk", xp, a1)                                 # (B, K)
    s2 = jnp.einsum("bkw,w->bk", h, a2)                                  # (B, K)
    e = s1[:, :, None] + s2[:, None, :]                                  # (B, K, K)
    e = jnp.where(e > 0, e, ALPHA * e)
    attn = jax.nn.softmax(e, axis=-1)
    out = jax.nn.sigmoid(jnp.einsum("bij,bjw->biw", attn, xp))           # (B, K, W)
    return jnp.transpose(out, (0, 2, 1))


if __name__ == "__main__":
    B, W, K = 16, 16, 8  # batch, window_size, n_features (small test shapes)

    key = jax.random.PRNGKey(0)
    kx, kw, kb, ka = jax.random.split(key, 4)

    x = jax.random.normal(kx, (B, W, K), dtype=jnp.float32)

    # nn.Linear(W, W): weight (W, W), bias (W,)
    bound = 1.0 / jnp.sqrt(W)
    wfc = jax.random.uniform(kw, (W, W), minval=-bound, maxval=bound, dtype=jnp.float32)
    bfc = jax.random.uniform(kb, (W,), minval=-bound, maxval=bound, dtype=jnp.float32)

    # attn parameter (2W, 1), xavier_uniform with gain=1.414 -> flattened (2W,)
    xav = 1.414 * jnp.sqrt(6.0 / (2 * W + 1))
    attn_param = jax.random.uniform(ka, (2 * W,), minval=-xav, maxval=xav,
                                    dtype=jnp.float32)

    ref = reference_forward(x, wfc, bfc, attn_param, n_features=K, window_size=W)

    # Explicit multiple-of-8 tile -> 2-step pipelined grid.
    fwd = jax.jit(functools.partial(feature_attention_forward,
                                    n_features=K, window_size=W, batch_tile=8))
    out = fwd(x, wfc, bfc, attn_param)
    jax.block_until_ready(out)
    assert out.shape == (B, W, K)
    assert jnp.allclose(out, ref, atol=1e-4, rtol=1e-4), float(jnp.max(jnp.abs(out - ref)))

    # Auto (padding-aware, VMEM-budgeted) tile sizing path; still a 2-step grid for B=16.
    fwd_auto = jax.jit(functools.partial(feature_attention_forward,
                                         n_features=K, window_size=W))
    out2 = fwd_auto(x, wfc, bfc, attn_param)
    jax.block_until_ready(out2)
    assert jnp.allclose(out2, ref, atol=1e-4, rtol=1e-4), float(jnp.max(jnp.abs(out2 - ref)))

    print("KERNEL_OK")
</pallas_src>

<mosaic_0001>
module attributes {stable_mosaic.version = 11 : i64} {
  func.func @feature_attention_kernel(%arg0: i32, %arg1: memref<8x16x8xf32, #tpu.memory_space<vmem>>, %arg2: memref<16x1xf32, #tpu.memory_space<vmem>>, %arg3: memref<16x1xf32, #tpu.memory_space<vmem>>, %arg4: memref<1x1xf32, #tpu.memory_space<vmem>>, %arg5: memref<8x16x8xf32, #tpu.memory_space<vmem>>) attributes {dimension_semantics = [#tpu.dimension_semantics<parallel>], iteration_bounds = array<i64: 2>, scalar_prefetch = 0 : i64, scratch_operands = 0 : i64, tpu.core_type = #tpu.core_type<tc>, window_params = [{transform_indices = @transform_0, window_bounds = array<i64: 8, 16, 8>}, {pipeline_mode = #tpu.pipeline_mode<synchronous>, transform_indices = @transform_1, window_bounds = array<i64: 16, 1>}, {pipeline_mode = #tpu.pipeline_mode<synchronous>, transform_indices = @transform_2, window_bounds = array<i64: 16, 1>}, {pipeline_mode = #tpu.pipeline_mode<synchronous>, transform_indices = @transform_3, window_bounds = array<i64: 1, 1>}, {transform_indices = @transform_4, window_bounds = array<i64: 8, 16, 8>}]} {
    %c0 = arith.constant 0 : index
    %c0_0 = arith.constant 0 : index
    %c0_1 = arith.constant 0 : index
    %0 = vector.load %arg1[%c0, %c0_0, %c0_1] : memref<8x16x8xf32, #tpu.memory_space<vmem>>, vector<8x16x8xf32>
    %c0_2 = arith.constant 0 : index
    %c0_3 = arith.constant 0 : index
    %1 = vector.load %arg2[%c0_2, %c0_3] : memref<16x1xf32, #tpu.memory_space<vmem>>, vector<16x1xf32>
    %2 = vector.shape_cast %1 : vector<16x1xf32> to vector<1x16x1xf32>
    %3 = vector.broadcast %2 : vector<1x16x1xf32> to vector<8x16x8xf32>
    %4 = arith.mulf %0, %3 : vector<8x16x8xf32>
    %cst = arith.constant dense<0.000000e+00> : vector<8x8xf32>
    %5 = vector.multi_reduction <add>, %4, %cst [1] : vector<8x16x8xf32> to vector<8x8xf32>
    %c0_4 = arith.constant 0 : index
    %c0_5 = arith.constant 0 : index
    %6 = vector.load %arg3[%c0_4, %c0_5] : memref<16x1xf32, #tpu.memory_space<vmem>>, vector<16x1xf32>
    %7 = vector.shape_cast %6 : vector<16x1xf32> to vector<1x16x1xf32>
    %8 = vector.broadcast %7 : vector<1x16x1xf32> to vector<8x16x8xf32>
    %9 = arith.mulf %0, %8 : vector<8x16x8xf32>
    %cst_6 = arith.constant dense<0.000000e+00> : vector<8x8xf32>
    %10 = vector.multi_reduction <add>, %9, %cst_6 [1] : vector<8x16x8xf32> to vector<8x8xf32>
    %c0_7 = arith.constant 0 : index
    %c0_8 = arith.constant 0 : index
    %11 = vector.load %arg4[%c0_7, %c0_8] : memref<1x1xf32, #tpu.memory_space<vmem>>, vector<1x1xf32>
    %12 = vector.broadcast %11 : vector<1x1xf32> to vector<8x8xf32>
    %13 = arith.addf %10, %12 : vector<8x8xf32>
    %cst_9 = arith.constant dense<0xFF800000> : vector<8xf32>
    %14 = vector.multi_reduction <maximumf>, %13, %cst_9 [1] : vector<8x8xf32> to vector<8xf32>
    %15 = vector.shape_cast %14 : vector<8xf32> to vector<8x1xf32>
    %16 = vector.broadcast %15 : vector<8x1xf32> to vector<8x8xf32>
    %17 = arith.addf %5, %16 : vector<8x8xf32>
    %cst_10 = arith.constant 0.000000e+00 : f32
    %18 = vector.broadcast %cst_10 : f32 to vector<8x8xf32>
    %19 = arith.cmpf ogt, %17, %18 : vector<8x8xf32>
    %cst_11 = arith.constant 2.000000e-01 : f32
    %20 = vector.broadcast %cst_11 : f32 to vector<8x8xf32>
    %21 = arith.mulf %20, %17 : vector<8x8xf32>
    %22 = arith.select %19, %17, %21 : vector<8x8xi1>, vector<8x8xf32>
    %23 = vector.shape_cast %5 : vector<8x8xf32> to vector<8x8x1xf32>
    %24 = vector.shape_cast %13 : vector<8x8xf32> to vector<8x1x8xf32>
    %25 = vector.broadcast %23 : vector<8x8x1xf32> to vector<8x8x8xf32>
    %26 = vector.broadcast %24 : vector<8x1x8xf32> to vector<8x8x8xf32>
    %27 = arith.addf %25, %26 : vector<8x8x8xf32>
    %cst_12 = arith.constant 0.000000e+00 : f32
    %28 = vector.broadcast %cst_12 : f32 to vector<8x8x8xf32>
    %29 = arith.cmpf ogt, %27, %28 : vector<8x8x8xf32>
    %cst_13 = arith.constant 2.000000e-01 : f32
    %30 = vector.broadcast %cst_13 : f32 to vector<8x8x8xf32>
    %31 = arith.mulf %30, %27 : vector<8x8x8xf32>
    %32 = arith.select %29, %27, %31 : vector<8x8x8xi1>, vector<8x8x8xf32>
    %33 = vector.shape_cast %22 : vector<8x8xf32> to vector<8x8x1xf32>
    %34 = vector.broadcast %33 : vector<8x8x1xf32> to vector<8x8x8xf32>
    %35 = arith.subf %32, %34 : vector<8x8x8xf32>
    %36 = math.exp %35 : vector<8x8x8xf32>
    %cst_14 = arith.constant dense<0.000000e+00> : vector<8x8xf32>
    %37 = vector.multi_reduction <add>, %36, %cst_14 [2] : vector<8x8x8xf32> to vector<8x8xf32>
    %38 = vector.shape_cast %37 : vector<8x8xf32> to vector<8x8x1xf32>
    %39 = tpu.reciprocal %38 {approx = true} : vector<8x8x1xf32> -> vector<8x8x1xf32>
    %40 = arith.mulf %38, %39 : vector<8x8x1xf32>
    %cst_15 = arith.constant 2.000000e+00 : f32
    %41 = vector.broadcast %cst_15 : f32 to vector<8x8x1xf32>
    %42 = arith.subf %41, %40 : vector<8x8x1xf32>
    %43 = arith.mulf %39, %42 : vector<8x8x1xf32>
    %44 = vector.broadcast %43 : vector<8x8x1xf32> to vector<8x8x8xf32>
    %45 = arith.mulf %36, %44 : vector<8x8x8xf32>
    %cst_16 = arith.constant dense<0.000000e+00> : vector<8x16x8xf32>
    %46 = tpu.matmul %0, %45, %cst_16 {dimension_numbers = #tpu.dot_dimension_numbers<[2], [2], [1], [1], [0, 0, 0, 1, 1, 1], [0], [0]>} : vector<8x16x8xf32>, vector<8x8x8xf32>, vector<8x16x8xf32> -> vector<8x16x8xf32>
    %47 = arith.negf %46 : vector<8x16x8xf32>
    %48 = math.exp %47 : vector<8x16x8xf32>
    %cst_17 = arith.constant 1.000000e+00 : f32
    %49 = vector.broadcast %cst_17 : f32 to vector<8x16x8xf32>
    %50 = arith.addf %49, %48 : vector<8x16x8xf32>
    %51 = arith.divf %49, %50 : vector<8x16x8xf32>
    %c0_18 = arith.constant 0 : index
    %c0_19 = arith.constant 0 : index
    %c0_20 = arith.constant 0 : index
    %52 = vector.load %arg5[%c0_18, %c0_19, %c0_20] : memref<8x16x8xf32, #tpu.memory_space<vmem>>, vector<8x16x8xf32>
    tpu.vector_store %arg5[%c0_18, %c0_19, %c0_20], %51 {strides = array<i32>} : memref<8x16x8xf32, #tpu.memory_space<vmem>>, vector<8x16x8xf32>,
    return
  }
  func.func @transform_0(%arg0: i32) -> (i32, i32, i32) {
    %c0_i32 = arith.constant 0 : i32
    %c0_i32_0 = arith.constant 0 : i32
    %c0_i32_1 = arith.constant 0 : i32
    return %arg0, %c0_i32, %c0_i32_0 : i32, i32, i32
  }
  func.func @transform_1(%arg0: i32) -> (i32, i32) {
    %c0_i32 = arith.constant 0 : i32
    %c0_i32_0 = arith.constant 0 : i32
    %c0_i32_1 = arith.constant 0 : i32
    return %c0_i32, %c0_i32_0 : i32, i32
  }
  func.func @transform_2(%arg0: i32) -> (i32, i32) {
    %c0_i32 = arith.constant 0 : i32
    %c0_i32_0 = arith.constant 0 : i32
    %c0_i32_1 = arith.constant 0 : i32
    return %c0_i32, %c0_i32_0 : i32, i32
  }
  func.func @transform_3(%arg0: i32) -> (i32, i32) {
    %c0_i32 = arith.constant 0 : i32
    %c0_i32_0 = arith.constant 0 : i32
    %c0_i32_1 = arith.constant 0 : i32
    return %c0_i32, %c0_i32_0 : i32, i32
  }
  func.func @transform_4(%arg0: i32) -> (i32, i32, i32) {
    %c0_i32 = arith.constant 0 : i32
    %c0_i32_0 = arith.constant 0 : i32
    %c0_i32_1 = arith.constant 0 : i32
    return %arg0, %c0_i32, %c0_i32_0 : i32, i32, i32
  }
}

</mosaic_0001>

<llo_original>
// kernel: feature_attention_forward.1
$region0: #{feature_attention_forward.1}
  #allocation0 [shape = 'u32[]', space=smem, size = 0x4, offset = 0x4, fixed_abs, tag = 'smem constant byte address 0x4 - core index']
  #allocation1 [shape = 'u32[144,128]{1,0:T(1,128)}', space=vmem, size = 0x12000, scoped, tag = 'internal scratch']
  #allocation2 [shape = 'f32[1,1]{1,0:T(1,128)S(1)}', space=vmem, size = 0x200, scoped, tag = 'scoped memory for feature_attention_forward.1']
  %s0 = inlined_call_operand.vmem [shape: f32[16,16,8], index: 0, kind: input, shape index: {}]
  %s1 = inlined_call_operand.vmem [shape: f32[16,1], index: 1, kind: input, shape index: {}]
  %s2 = inlined_call_operand.vmem [shape: f32[16,1], index: 2, kind: input, shape index: {}]
  %s3 = inlined_call_operand.<no memory space> [shape: f32[1,1], index: 3, kind: input, shape index: {}]
  %s4 = inlined_call_operand.vmem [shape: f32[16,16,8], index: 4, kind: output, shape index: {}]
  %s5 = sld [smem:[#allocation0]]
  $region49: #{feature_attention_forward.1} parent=0
    _
  %s7 = ssub.s32 1, %s5
  %s8 = scalar_select 0, %s7, %s5
  %v9 = vstv %s3
  %10 = vst [vmem:[#allocation2] sm:$0x1] %v9
  loop: start=0, step=1, limit=4
  $region2: #{feature_attention_forward.1} parent=0 // loop_pre_header
    _
  $region3: #{feature_attention_forward.1} parent=0 // loop_header
    %s12 = sphi 0, %s16
    %p13 = scmp.ge.s32.totalorder %s12, 4
    %s22 = sphi 0, %s24
    %s25 = sphi 0, %s22
    %s26 = sphi 0, %s25
    %s42 = sphi 0, %s26
    %s46 = sphi 0, %s46
    %s48 = sphi 0, %s46
    %s49 = sphi 0, %s48
    %s63 = sphi 0, %s49
    %s67 = sphi 0, %s67
    %s69 = sphi 0, %s67
    %s70 = sphi 0, %s69
    %s84 = sphi 0, %s70
    %s88 = sphi 0, %s88
    %s90 = sphi 0, %s88
    %s91 = sphi 0, %s90
    %s105 = sphi 0, %s91
    %s111 = sphi 0, %s113
    %s114 = sphi 0, %s111
    %s115 = sphi 0, %s114
    %s131 = sphi 0, %s115
  $region4: #{feature_attention_forward.1} parent=0 // loop_header_branch
    %15 = sbr.rel (%p13) target = $region8
  $region5: #{feature_attention_forward.1} parent=0 // loop_body
    %s17 = ssub.s32 %s12, 1
    %s18 = ssub.s32 %s12, 2
    %s19 = sadd.s32 %s12, 1
    %s20 = ssub.s32 %s12, %s19
    %p21 = scmp.eq.s32.totalorder %s20, 0
    %s23 = sadd.s32 %s22, 1
    %s24 = scalar_select %p21, %s22, %s23
    %p27 = pneg %p21
    %p28 = scmp.eq.s32.totalorder %s12, 1
    %p29 = por %p27, %p28
    %p30 = scmp.ne.s32.totalorder %s22, %s25
    %p31 = scmp.eq.s32.totalorder %s12, 0
    %p32 = por %p30, %p31
    %p33 = scmp.ne.s32.totalorder %s22, %s25
    %p34 = scmp.eq.s32.totalorder %s17, 1
    %p35 = por %p33, %p34
    %p36 = scmp.ne.s32.totalorder %s25, %s26
    %p37 = scmp.eq.s32.totalorder %s17, 0
    %p38 = por %p36, %p37
    %p39 = scmp.ne.s32.totalorder %s25, %s26
    %p40 = scmp.eq.s32.totalorder %s18, 1
    %p41 = por %p39, %p40
    %p43 = scmp.ne.s32.totalorder %s26, %s42
    %p44 = scmp.eq.s32.totalorder %s18, 0
    %p45 = por %p43, %p44
    %s47 = sadd.s32 %s46, 1
    %p50 = scmp.eq.s32.totalorder %s12, 1
    %p51 = scmp.ne.s32.totalorder %s46, %s48
    %p52 = scmp.eq.s32.totalorder %s12, 0
    %p53 = por %p51, %p52
    %p54 = scmp.ne.s32.totalorder %s46, %s48
    %p55 = scmp.eq.s32.totalorder %s17, 1
    %p56 = por %p54, %p55
    %p57 = scmp.ne.s32.totalorder %s48, %s49
    %p58 = scmp.eq.s32.totalorder %s17, 0
    %p59 = por %p57, %p58
    %p60 = scmp.ne.s32.totalorder %s48, %s49
    %p61 = scmp.eq.s32.totalorder %s18, 1
    %p62 = por %p60, %p61
    %p64 = scmp.ne.s32.totalorder %s49, %s63
    %p65 = scmp.eq.s32.totalorder %s18, 0
    %p66 = por %p64, %p65
    %s68 = sadd.s32 %s67, 1
    %p71 = scmp.eq.s32.totalorder %s12, 1
    %p72 = scmp.ne.s32.totalorder %s67, %s69
    %p73 = scmp.eq.s32.totalorder %s12, 0
    %p74 = por %p72, %p73
    %p75 = scmp.ne.s32.totalorder %s67, %s69
    %p76 = scmp.eq.s32.totalorder %s17, 1
    %p77 = por %p75, %p76
    %p78 = scmp.ne.s32.totalorder %s69, %s70
    %p79 = scmp.eq.s32.totalorder %s17, 0
    %p80 = por %p78, %p79
    %p81 = scmp.ne.s32.totalorder %s69, %s70
    %p82 = scmp.eq.s32.totalorder %s18, 1
    %p83 = por %p81, %p82
    %p85 = scmp.ne.s32.totalorder %s70, %s84
    %p86 = scmp.eq.s32.totalorder %s18, 0
    %p87 = por %p85, %p86
    %s89 = sadd.s32 %s88, 1
    %p92 = scmp.eq.s32.totalorder %s12, 1
    %p93 = scmp.ne.s32.totalorder %s88, %s90
    %p94 = scmp.eq.s32.totalorder %s12, 0
    %p95 = por %p93, %p94
    %p96 = scmp.ne.s32.totalorder %s88, %s90
    %p97 = scmp.eq.s32.totalorder %s17, 1
    %p98 = por %p96, %p97
    %p99 = scmp.ne.s32.totalorder %s90, %s91
    %p100 = scmp.eq.s32.totalorder %s17, 0
    %p101 = por %p99, %p100
    %p102 = scmp.ne.s32.totalorder %s90, %s91
    %p103 = scmp.eq.s32.totalorder %s18, 1
    %p104 = por %p102, %p103
    %p106 = scmp.ne.s32.totalorder %s91, %s105
    %p107 = scmp.eq.s32.totalorder %s18, 0
    %p108 = por %p106, %p107
    %s109 = ssub.s32 %s12, %s19
    %p110 = scmp.eq.s32.totalorder %s109, 0
    %s112 = sadd.s32 %s111, 1
    %s113 = scalar_select %p110, %s111, %s112
    %p116 = pneg %p110
    %p117 = scmp.eq.s32.totalorder %s12, 1
    %p118 = por %p116, %p117
    %p119 = scmp.ne.s32.totalorder %s111, %s114
    %p120 = scmp.eq.s32.totalorder %s12, 0
    %p121 = por %p119, %p120
    %p122 = scmp.ne.s32.totalorder %s111, %s114
    %p123 = scmp.eq.s32.totalorder %s17, 1
    %p124 = por %p122, %p123
    %p125 = scmp.ne.s32.totalorder %s114, %s115
    %p126 = scmp.eq.s32.totalorder %s17, 0
    %p127 = por %p125, %p126
    %p128 = scmp.ne.s32.totalorder %s114, %s115
    %p129 = scmp.eq.s32.totalorder %s18, 1
    %p130 = por %p128, %p129
    %p132 = scmp.ne.s32.totalorder %s115, %s131
    %p133 = scmp.eq.s32.totalorder %s18, 0
    %p134 = por %p132, %p133
    %p135 = scmp.le.s32.totalorder 1, %s12
    %p136 = scmp.lt.s32.totalorder %s12, 3
    %p137 = pnand %p135, %p136
    %p138 = pneg %p137
    // Predicated region
    $region9: #{feature_attention_forward.1} parent=5 // pred_check
      _
    $region10: #{feature_attention_forward.1} parent=5 // pred_check_branch
      %140 = sbr.rel (%p137) target = $region12
    $region11: #{feature_attention_forward.1} parent=5 // pred_region
      %s141 = ssub.s32 %s12, 1
      // Predicated region
      $region13: #{feature_attention_forward.1} parent=11 // pred_check
        %p142 = pneg %p59
      $region14: #{feature_attention_forward.1} parent=11 // pred_check_branch
        %144 = sbr.rel (%p142) target = $region16
      $region15: #{feature_attention_forward.1} parent=11 // pred_region
        _
      $region16: #{feature_attention_forward.1} parent=11 // pred_fallthru
        _
      // Predicated region
      $region17: #{feature_attention_forward.1} parent=11 // pred_check
        %p145 = pneg %p80
      $region18: #{feature_attention_forward.1} parent=11 // pred_check_branch
        %147 = sbr.rel (%p145) target = $region20
      $region19: #{feature_attention_forward.1} parent=11 // pred_region
        _
      $region20: #{feature_attention_forward.1} parent=11 // pred_fallthru
        _
      // Predicated region
      $region21: #{feature_attention_forward.1} parent=11 // pred_check
        %p148 = pneg %p101
      $region22: #{feature_attention_forward.1} parent=11 // pred_check_branch
        %150 = sbr.rel (%p148) target = $region24
      $region23: #{feature_attention_forward.1} parent=11 // pred_region
        _
      $region24: #{feature_attention_forward.1} parent=11 // pred_fallthru
        _
    $region12: #{feature_attention_forward.1} parent=5 // pred_fallthru
      _
    %p151 = scmp.lt.s32.totalorder %s12, 2
    // Predicated region
    $region25: #{feature_attention_forward.1} parent=5 // pred_check
      %p152 = pneg %p151
    $region26: #{feature_attention_forward.1} parent=5 // pred_check_branch
      %154 = sbr.rel (%p152) target = $region28
    $region27: #{feature_attention_forward.1} parent=5 // pred_region
      // Predicated region
      $region29: #{feature_attention_forward.1} parent=27 // pred_check
        %p155 = pneg %p32
      $region30: #{feature_attention_forward.1} parent=27 // pred_check_branch
        %157 = sbr.rel (%p155) target = $region32
      $region31: #{feature_attention_forward.1} parent=27 // pred_region
        %s158 = smul.u32 8, %s12
        %p159 = scmp.lt.s32.totalorder %s158, 15
        %s160 = scalar_select %p159, %s158, 15
        %s161 = smul.addr %s160, 2
        %s162 = smul.addr %s161, 8
        %s163 = scalar_lea.vmem %s0, %s162
        %s164 = smul.u32 8, %s12
      $region32: #{feature_attention_forward.1} parent=27 // pred_fallthru
        _
    $region28: #{feature_attention_forward.1} parent=5 // pred_fallthru
      _
    %p165 = scmp.le.s32.totalorder 1, %s12
    %p166 = scmp.lt.s32.totalorder %s12, 3
    %p167 = pnand %p165, %p166
    %p168 = pneg %p167
    // Predicated region
    $region33: #{feature_attention_forward.1} parent=5 // pred_check
      _
    $region34: #{feature_attention_forward.1} parent=5 // pred_check_branch
      %170 = sbr.rel (%p167) target = $region36
    $region35: #{feature_attention_forward.1} parent=5 // pred_region
      %s171 = ssub.s32 %s12, 1
      %s172 = smul.u32 8, %s17
      %p173 = scmp.lt.s32.totalorder %s172, 15
      %s174 = scalar_select %p173, %s172, 15
      %s175 = smul.addr %s174, 2
      %s176 = smul.addr %s175, 8
      %s177 = scalar_lea.vmem %s0, %s176
      %p178 = pneg %p38
      %p179 = pneg %p35
      %p180 = pneg %p59
      %p181 = pneg %p56
      %p182 = pneg %p80
      %p183 = pneg %p77
      %p184 = pneg %p101
      %p185 = pneg %p98
      %p186 = pneg %p127
      %p187 = pneg %p124
      %s188 = smul.u32 8, %s17
      %p189 = scmp.lt.s32.totalorder %s188, 15
      %s190 = scalar_select %p189, %s188, 15
      %s191 = smul.addr %s190, 2
      %s192 = smul.addr %s191, 8
      %s193 = scalar_lea.vmem %s4, %s192
      %s194 = smul.u32 8, %s17
      %p195 = scmp.lt.s32.totalorder %s194, 15
      %s196 = scalar_select %p195, %s194, 15
      %s197 = smul.addr %s196, 2
      %s198 = smul.addr %s197, 8
      %s199 = scalar_lea.vmem %s0, %s198
      %s200 = smul.u32 8, %s17
      %s201 = smul.u32 8, %s17
      %p202 = scmp.lt.s32.totalorder %s201, 15
      %s203 = scalar_select %p202, %s201, 15
      %s204 = smul.addr %s203, 2
      %s205 = smul.addr %s204, 8
      %s206 = scalar_lea.vmem %s4, %s205
      %s207 = smul.u32 8, %s17
      %v208 = vld [vmem:[%s199] sm:$0xff]
      %v209 = vld [vmem:[%s199 + $0x8] sm:$0xff]
      %v210 = vld [vmem:[%s199 + $0x10] sm:$0xff]
      %v211 = vld [vmem:[%s199 + $0x18] sm:$0xff]
      %v212 = vld [vmem:[%s199 + $0x20] sm:$0xff]
      %v213 = vld [vmem:[%s199 + $0x28] sm:$0xff]
      %v214 = vld [vmem:[%s199 + $0x30] sm:$0xff]
      %v215 = vld [vmem:[%s199 + $0x38] sm:$0xff]
      %v216 = vld [vmem:[%s199 + $0x40] sm:$0xff]
      %v217 = vld [vmem:[%s199 + $0x48] sm:$0xff]
      %v218 = vld [vmem:[%s199 + $0x50] sm:$0xff]
      %v219 = vld [vmem:[%s199 + $0x58] sm:$0xff]
      %v220 = vld [vmem:[%s199 + $0x60] sm:$0xff]
      %v221 = vld [vmem:[%s199 + $0x68] sm:$0xff]
      %v222 = vld [vmem:[%s199 + $0x70] sm:$0xff]
      %v223 = vld [vmem:[%s199 + $0x78] sm:$0xff]
      %v224 = vld [vmem:[%s1] sm:$0xff]
      %v225 = vld [vmem:[%s1 + $0x8] sm:$0xff]
      %227 = vset.pattern.permute.xlu0 0
      %228 = vperm.xlu0 %227, %v224
      %v229 = vpop.permute.xlu0 %228
      %232 = vset.pattern.permute.xlu0 0
      %233 = vperm.xlu0 %232, %v225
      %v234 = vpop.permute.xlu0 %233
      %v236 = vmul.f32 %v208, %v229
      %v237 = vmul.f32 %v209, %v234
      %v238 = vmul.f32 %v210, %v229
      %v239 = vmul.f32 %v211, %v234
      %v240 = vmul.f32 %v212, %v229
      %v241 = vmul.f32 %v213, %v234
      %v242 = vmul.f32 %v214, %v229
      %v243 = vmul.f32 %v215, %v234
      %v244 = vmul.f32 %v216, %v229
      %v245 = vmul.f32 %v217, %v234
      %v246 = vmul.f32 %v218, %v229
      %v247 = vmul.f32 %v219, %v234
      %v248 = vmul.f32 %v220, %v229
      %v249 = vmul.f32 %v221, %v234
      %v250 = vmul.f32 %v222, %v229
      %v251 = vmul.f32 %v223, %v234
      %vm252 = vcmask 64512
      %v253 = vsel %vm252, %v236, 0.0
      %v254 = vsel %vm252, %v237, 0.0
      %v255 = vadd.f32 %v253, %v254
      %v256 = vrot.slane %v255, 4
      %v257 = vadd.f32 %v255, %v256
      %v258 = vrot.slane %v257, 2
      %v259 = vadd.f32 %v257, %v258
      %v260 = vrot.slane %v259, 1
      %v261 = vadd.f32 %v259, %v260
      %v262 = vsel %vm252, %v238, 0.0
      %v263 = vsel %vm252, %v239, 0.0
      %v264 = vadd.f32 %v262, %v263
      %v265 = vrot.slane %v264, 4
      %v266 = vadd.f32 %v264, %v265
      %v267 = vrot.slane %v266, 2
      %v268 = vadd.f32 %v266, %v267
      %v269 = vrot.slane %v268, 1
      %v270 = vadd.f32 %v268, %v269
      %v271 = vsel %vm252, %v240, 0.0
      %v272 = vsel %vm252, %v241, 0.0
      %v273 = vadd.f32 %v271, %v272
      %v274 = vrot.slane %v273, 4
      %v275 = vadd.f32 %v273, %v274
      %v276 = vrot.slane %v275, 2
      %v277 = vadd.f32 %v275, %v276
      %v278 = vrot.slane %v277, 1
      %v279 = vadd.f32 %v277, %v278
      %v280 = vsel %vm252, %v242, 0.0
      %v281 = vsel %vm252, %v243, 0.0
      %v282 = vadd.f32 %v280, %v281
      %v283 = vrot.slane %v282, 4
      %v284 = vadd.f32 %v282, %v283
      %v285 = vrot.slane %v284, 2
      %v286 = vadd.f32 %v284, %v285
      %v287 = vrot.slane %v286, 1
      %v288 = vadd.f32 %v286, %v287
      %v289 = vsel %vm252, %v244, 0.0
      %v290 = vsel %vm252, %v245, 0.0
      %v291 = vadd.f32 %v289, %v290
      %v292 = vrot.slane %v291, 4
      %v293 = vadd.f32 %v291, %v292
      %v294 = vrot.slane %v293, 2
      %v295 = vadd.f32 %v293, %v294
      %v296 = vrot.slane %v295, 1
      %v297 = vadd.f32 %v295, %v296
      %v298 = vsel %vm252, %v246, 0.0
      %v299 = vsel %vm252, %v247, 0.0
      %v300 = vadd.f32 %v298, %v299
      %v301 = vrot.slane %v300, 4
      %v302 = vadd.f32 %v300, %v301
      %v303 = vrot.slane %v302, 2
      %v304 = vadd.f32 %v302, %v303
      %v305 = vrot.slane %v304, 1
      %v306 = vadd.f32 %v304, %v305
      %v307 = vsel %vm252, %v248, 0.0
      %v308 = vsel %vm252, %v249, 0.0
      %v309 = vadd.f32 %v307, %v308
      %v310 = vrot.slane %v309, 4
      %v311 = vadd.f32 %v309, %v310
      %v312 = vrot.slane %v311, 2
      %v313 = vadd.f32 %v311, %v312
      %v314 = vrot.slane %v313, 1
      %v315 = vadd.f32 %v313, %v314
      %v316 = vsel %vm252, %v250, 0.0
      %v317 = vsel %vm252, %v251, 0.0
      %v318 = vadd.f32 %v316, %v317
      %v319 = vrot.slane %v318, 4
      %v320 = vadd.f32 %v318, %v319
      %v321 = vrot.slane %v320, 2
      %v322 = vadd.f32 %v320, %v321
      %v323 = vrot.slane %v322, 1
      %v324 = vadd.f32 %v322, %v323
      %v325 = vld [vmem:[%s2] sm:$0xff]
      %v326 = vld [vmem:[%s2 + $0x8] sm:$0xff]
      %328 = vset.pattern.permute.xlu0 0
      %329 = vperm.xlu0 %328, %v325
      %v330 = vpop.permute.xlu0 %329
      %333 = vset.pattern.permute.xlu0 0
      %334 = vperm.xlu0 %333, %v326
      %v335 = vpop.permute.xlu0 %334
      %v337 = vmul.f32 %v208, %v330
      %v338 = vmul.f32 %v209, %v335
      %v339 = vmul.f32 %v210, %v330
      %v340 = vmul.f32 %v211, %v335
      %v341 = vmul.f32 %v212, %v330
      %v342 = vmul.f32 %v213, %v335
      %v343 = vmul.f32 %v214, %v330
      %v344 = vmul.f32 %v215, %v335
      %v345 = vmul.f32 %v216, %v330
      %v346 = vmul.f32 %v217, %v335
      %v347 = vmul.f32 %v218, %v330
      %v348 = vmul.f32 %v219, %v335
      %v349 = vmul.f32 %v220, %v330
      %v350 = vmul.f32 %v221, %v335
      %v351 = vmul.f32 %v222, %v330
      %v352 = vmul.f32 %v223, %v335
      %v353 = vsel %vm252, %v337, 0.0
      %v354 = vsel %vm252, %v338, 0.0
      %v355 = vadd.f32 %v353, %v354
      %v356 = vrot.slane %v355, 4
      %v357 = vadd.f32 %v355, %v356
      %v358 = vrot.slane %v357, 2
      %v359 = vadd.f32 %v357, %v358
      %v360 = vrot.slane %v359, 1
      %v361 = vadd.f32 %v359, %v360
      %v362 = vsel %vm252, %v339, 0.0
      %v363 = vsel %vm252, %v340, 0.0
      %v364 = vadd.f32 %v362, %v363
      %v365 = vrot.slane %v364, 4
      %v366 = vadd.f32 %v364, %v365
      %v367 = vrot.slane %v366, 2
      %v368 = vadd.f32 %v366, %v367
      %v369 = vrot.slane %v368, 1
      %v370 = vadd.f32 %v368, %v369
      %v371 = vsel %vm252, %v341, 0.0
      %v372 = vsel %vm252, %v342, 0.0
      %v373 = vadd.f32 %v371, %v372
      %v374 = vrot.slane %v373, 4
      %v375 = vadd.f32 %v373, %v374
      %v376 = vrot.slane %v375, 2
      %v377 = vadd.f32 %v375, %v376
      %v378 = vrot.slane %v377, 1
      %v379 = vadd.f32 %v377, %v378
      %v380 = vsel %vm252, %v343, 0.0
      %v381 = vsel %vm252, %v344, 0.0
      %v382 = vadd.f32 %v380, %v381
      %v383 = vrot.slane %v382, 4
      %v384 = vadd.f32 %v382, %v383
      %v385 = vrot.slane %v384, 2
      %v386 = vadd.f32 %v384, %v385
      %v387 = vrot.slane %v386, 1
      %v388 = vadd.f32 %v386, %v387
      %v389 = vsel %vm252, %v345, 0.0
      %v390 = vsel %vm252, %v346, 0.0
      %v391 = vadd.f32 %v389, %v390
      %v392 = vrot.slane %v391, 4
      %v393 = vadd.f32 %v391, %v392
      %v394 = vrot.slane %v393, 2
      %v395 = vadd.f32 %v393, %v394
      %v396 = vrot.slane %v395, 1
      %v397 = vadd.f32 %v395, %v396
      %v398 = vsel %vm252, %v347, 0.0
      %v399 = vsel %vm252, %v348, 0.0
      %v400 = vadd.f32 %v398, %v399
      %v401 = vrot.slane %v400, 4
      %v402 = vadd.f32 %v400, %v401
      %v403 = vrot.slane %v402, 2
      %v404 = vadd.f32 %v402, %v403
      %v405 = vrot.slane %v404, 1
      %v406 = vadd.f32 %v404, %v405
      %v407 = vsel %vm252, %v349, 0.0
      %v408 = vsel %vm252, %v350, 0.0
      %v409 = vadd.f32 %v407, %v408
      %v410 = vrot.slane %v409, 4
      %v411 = vadd.f32 %v409, %v410
      %v412 = vrot.slane %v411, 2
      %v413 = vadd.f32 %v411, %v412
      %v414 = vrot.slane %v413, 1
      %v415 = vadd.f32 %v413, %v414
      %v416 = vsel %vm252, %v351, 0.0
      %v417 = vsel %vm252, %v352, 0.0
      %v418 = vadd.f32 %v416, %v417
      %v419 = vrot.slane %v418, 4
      %v420 = vadd.f32 %v418, %v419
      %v421 = vrot.slane %v420, 2
      %v422 = vadd.f32 %v420, %v421
      %v423 = vrot.slane %v422, 1
      %v424 = vadd.f32 %v422, %v423
      %v425 = vld [vmem:[#allocation2] sm:$0x1]
      %v427 = vlaneseq
      %v428 = vshrl.u32 %v427, 7
      %v429 = vsub.s32 0, %v428
      %v430 = vrot.slane %v425, %v429
      %431 = vset.pattern.permute.xlu0 0
      %432 = vperm.xlu0 %431, %v430
      %v433 = vpop.permute.xlu0 %432
      %v435 = vadd.f32 %v361, %v433
      %v436 = vadd.f32 %v370, %v433
      %v437 = vadd.f32 %v379, %v433
      %v438 = vadd.f32 %v388, %v433
      %v439 = vadd.f32 %v397, %v433
      %v440 = vadd.f32 %v406, %v433
      %v441 = vadd.f32 %v415, %v433
      %v442 = vadd.f32 %v424, %v433
      %vm451 = vcmask 1041409
      %v452 = vsel %vm451, %v436, %v435
      %vm453 = vcmask 1042434
      %v454 = vsel %vm453, %v437, %v452
      %vm455 = vcmask 1043459
      %v456 = vsel %vm455, %v438, %v454
      %vm457 = vcmask 1044484
      %v458 = vsel %vm457, %v439, %v456
      %vm459 = vcmask 1045509
      %v460 = vsel %vm459, %v440, %v458
      %vm461 = vcmask 1046534
      %v462 = vsel %vm461, %v441, %v460
      %vm463 = vcmask 1047559
      %v464 = vsel %vm463, %v442, %v462
      %v466 = vsel %vm252, %v464, -inf
      %467 = vmax.xlane.f32.xlu0 %v466
      %v468 = vpop.xlane.xlu0 %467
      %v470 = vrot.slane %v468, 1
      %v471 = vrot.slane %v468, 2
      %v472 = vrot.slane %v468, 3
      %v473 = vrot.slane %v468, 4
      %v474 = vrot.slane %v468, 5
      %v475 = vrot.slane %v468, 6
      %v476 = vrot.slane %v468, 7
      %v485 = vadd.f32 %v261, %v468
      %v486 = vadd.f32 %v270, %v470
      %v487 = vadd.f32 %v279, %v471
      %v488 = vadd.f32 %v288, %v472
      %v489 = vadd.f32 %v297, %v473
      %v490 = vadd.f32 %v306, %v474
      %v491 = vadd.f32 %v315, %v475
      %v492 = vadd.f32 %v324, %v476
      %vm493 = vcmp.gt.f32.partialorder %v485, 0.0
      %vm494 = vcmp.gt.f32.partialorder %v486, 0.0
      %vm495 = vcmp.gt.f32.partialorder %v487, 0.0
      %vm496 = vcmp.gt.f32.partialorder %v488, 0.0
      %vm497 = vcmp.gt.f32.partialorder %v489, 0.0
      %vm498 = vcmp.gt.f32.partialorder %v490, 0.0
      %vm499 = vcmp.gt.f32.partialorder %v491, 0.0
      %vm500 = vcmp.gt.f32.partialorder %v492, 0.0
      %v501 = vmul.f32 %v485, 0.2
      %v502 = vmul.f32 %v486, 0.2
      %v503 = vmul.f32 %v487, 0.2
      %v504 = vmul.f32 %v488, 0.2
      %v505 = vmul.f32 %v489, 0.2
      %v506 = vmul.f32 %v490, 0.2
      %v507 = vmul.f32 %v491, 0.2
      %v508 = vmul.f32 %v492, 0.2
      %v509 = vsel %vm493, %v485, %v501
      %v510 = vsel %vm494, %v486, %v502
      %v511 = vsel %vm495, %v487, %v503
      %v512 = vsel %vm496, %v488, %v504
      %v513 = vsel %vm497, %v489, %v505
      %v514 = vsel %vm498, %v490, %v506
      %v515 = vsel %vm499, %v491, %v507
      %v516 = vsel %vm500, %v492, %v508
      %518 = vbcast.lane.b32.xlu0 %v261, 256
      %v519 = vpop.permute.xlu0 %518
      %521 = vbcast.lane.b32.xlu0 %v270, 256
      %v522 = vpop.permute.xlu0 %521
      %524 = vbcast.lane.b32.xlu0 %v279, 256
      %v525 = vpop.permute.xlu0 %524
      %527 = vbcast.lane.b32.xlu0 %v288, 256
      %v528 = vpop.permute.xlu0 %527
      %530 = vbcast.lane.b32.xlu0 %v297, 256
      %v531 = vpop.permute.xlu0 %530
      %533 = vbcast.lane.b32.xlu0 %v306, 256
      %v534 = vpop.permute.xlu0 %533
      %536 = vbcast.lane.b32.xlu0 %v315, 256
      %v537 = vpop.permute.xlu0 %536
      %539 = vbcast.lane.b32.xlu0 %v324, 256
      %v540 = vpop.permute.xlu0 %539
      %v541 = vadd.f32 %v519, %v435
      %v542 = vadd.f32 %v522, %v436
      %v543 = vadd.f32 %v525, %v437
      %v544 = vadd.f32 %v528, %v438
      %v545 = vadd.f32 %v531, %v439
      %v546 = vadd.f32 %v534, %v440
      %v547 = vadd.f32 %v537, %v441
      %v548 = vadd.f32 %v540, %v442
      %vm549 = vcmp.gt.f32.partialorder %v541, 0.0
      %vm550 = vcmp.gt.f32.partialorder %v542, 0.0
      %vm551 = vcmp.gt.f32.partialorder %v543, 0.0
      %vm552 = vcmp.gt.f32.partialorder %v544, 0.0
      %vm553 = vcmp.gt.f32.partialorder %v545, 0.0
      %vm554 = vcmp.gt.f32.partialorder %v546, 0.0
      %vm555 = vcmp.gt.f32.partialorder %v547, 0.0
      %vm556 = vcmp.gt.f32.partialorder %v548, 0.0
      %v557 = vmul.f32 %v541, 0.2
      %v558 = vmul.f32 %v542, 0.2
      %v559 = vmul.f32 %v543, 0.2
      %v560 = vmul.f32 %v544, 0.2
      %v561 = vmul.f32 %v545, 0.2
      %v562 = vmul.f32 %v546, 0.2
      %v563 = vmul.f32 %v547, 0.2
      %v564 = vmul.f32 %v548, 0.2
      %v565 = vsel %vm549, %v541, %v557
      %v566 = vsel %vm550, %v542, %v558
      %v567 = vsel %vm551, %v543, %v559
      %v568 = vsel %vm552, %v544, %v560
      %v569 = vsel %vm553, %v545, %v561
      %v570 = vsel %vm554, %v546, %v562
      %v571 = vsel %vm555, %v547, %v563
      %v572 = vsel %vm556, %v548, %v564
      %v573 = vlaneseq
      %v574 = vshrl.u32 %v573, 7
      %v575 = vsub.s32 0, %v574
      %v576 = vrot.slane %v509, %v575
      %578 = vbcast.lane.b32.xlu0 %v576, 256
      %v579 = vpop.permute.xlu0 %578
      %v580 = vlaneseq
      %v581 = vshrl.u32 %v580, 7
      %v582 = vsub.s32 0, %v581
      %v583 = vrot.slane %v510, %v582
      %585 = vbcast.lane.b32.xlu0 %v583, 256
      %v586 = vpop.permute.xlu0 %585
      %v587 = vlaneseq
      %v588 = vshrl.u32 %v587, 7
      %v589 = vsub.s32 0, %v588
      %v590 = vrot.slane %v511, %v589
      %592 = vbcast.lane.b32.xlu0 %v590, 256
      %v593 = vpop.permute.xlu0 %592
      %v594 = vlaneseq
      %v595 = vshrl.u32 %v594, 7
      %v596 = vsub.s32 0, %v595
      %v597 = vrot.slane %v512, %v596
      %599 = vbcast.lane.b32.xlu0 %v597, 256
      %v600 = vpop.permute.xlu0 %599
      %v601 = vlaneseq
      %v602 = vshrl.u32 %v601, 7
      %v603 = vsub.s32 0, %v602
      %v604 = vrot.slane %v513, %v603
      %606 = vbcast.lane.b32.xlu0 %v604, 256
      %v607 = vpop.permute.xlu0 %606
      %v608 = vlaneseq
      %v609 = vshrl.u32 %v608, 7
      %v610 = vsub.s32 0, %v609
      %v611 = vrot.slane %v514, %v610
      %613 = vbcast.lane.b32.xlu0 %v611, 256
      %v614 = vpop.permute.xlu0 %613
      %v615 = vlaneseq
      %v616 = vshrl.u32 %v615, 7
      %v617 = vsub.s32 0, %v616
      %v618 = vrot.slane %v515, %v617
      %620 = vbcast.lane.b32.xlu0 %v618, 256
      %v621 = vpop.permute.xlu0 %620
      %v622 = vlaneseq
      %v623 = vshrl.u32 %v622, 7
      %v624 = vsub.s32 0, %v623
      %v625 = vrot.slane %v516, %v624
      %627 = vbcast.lane.b32.xlu0 %v625, 256
      %v628 = vpop.permute.xlu0 %627
      %v629 = vsub.f32 %v565, %v579
      %v630 = vsub.f32 %v566, %v586
      %v631 = vsub.f32 %v567, %v593
      %v632 = vsub.f32 %v568, %v600
      %v633 = vsub.f32 %v569, %v607
      %v634 = vsub.f32 %v570, %v614
      %v635 = vsub.f32 %v571, %v621
      %v636 = vsub.f32 %v572, %v628
      %v637 = vmul.f32 %v629, 1.442695
      %v638 = vpow.pop %v637
      %v639 = vmul.f32 %v630, 1.442695
      %v640 = vpow.pop %v639
      %v641 = vmul.f32 %v631, 1.442695
      %v642 = vpow.pop %v641
      %v643 = vmul.f32 %v632, 1.442695
      %v644 = vpow.pop %v643
      %v645 = vmul.f32 %v633, 1.442695
      %v646 = vpow.pop %v645
      %v647 = vmul.f32 %v634, 1.442695
      %v648 = vpow.pop %v647
      %v649 = vmul.f32 %v635, 1.442695
      %v650 = vpow.pop %v649
      %v651 = vmul.f32 %v636, 1.442695
      %v652 = vpow.pop %v651
      %v653 = vsel %vm252, %v638, 0.0
      %654 = vadd.xlane.f32.xlu0 %v653
      %v655 = vpop.xlane.xlu0 %654
      %v656 = vsel %vm252, %v640, 0.0
      %657 = vadd.xlane.f32.xlu0 %v656
      %v658 = vpop.xlane.xlu0 %657
      %v659 = vsel %vm252, %v642, 0.0
      %660 = vadd.xlane.f32.xlu0 %v659
      %v661 = vpop.xlane.xlu0 %660
      %v662 = vsel %vm252, %v644, 0.0
      %663 = vadd.xlane.f32.xlu0 %v662
      %v664 = vpop.xlane.xlu0 %663
      %v665 = vsel %vm252, %v646, 0.0
      %666 = vadd.xlane.f32.xlu0 %v665
      %v667 = vpop.xlane.xlu0 %666
      %v668 = vsel %vm252, %v648, 0.0
      %669 = vadd.xlane.f32.xlu0 %v668
      %v670 = vpop.xlane.xlu0 %669
      %v671 = vsel %vm252, %v650, 0.0
      %672 = vadd.xlane.f32.xlu0 %v671
      %v673 = vpop.xlane.xlu0 %672
      %v674 = vsel %vm252, %v652, 0.0
      %675 = vadd.xlane.f32.xlu0 %v674
      %v676 = vpop.xlane.xlu0 %675
      %v677 = vrcp.pop %v655
      %v678 = vrcp.pop %v658
      %v679 = vrcp.pop %v661
      %v680 = vrcp.pop %v664
      %v681 = vrcp.pop %v667
      %v682 = vrcp.pop %v670
      %v683 = vrcp.pop %v673
      %v684 = vrcp.pop %v676
      %v685 = vmul.f32 %v655, %v677
      %v686 = vmul.f32 %v658, %v678
      %v687 = vmul.f32 %v661, %v679
      %v688 = vmul.f32 %v664, %v680
      %v689 = vmul.f32 %v667, %v681
      %v690 = vmul.f32 %v670, %v682
      %v691 = vmul.f32 %v673, %v683
      %v692 = vmul.f32 %v676, %v684
      %v693 = vsub.f32 2.0, %v685
      %v694 = vsub.f32 2.0, %v686
      %v695 = vsub.f32 2.0, %v687
      %v696 = vsub.f32 2.0, %v688
      %v697 = vsub.f32 2.0, %v689
      %v698 = vsub.f32 2.0, %v690
      %v699 = vsub.f32 2.0, %v691
      %v700 = vsub.f32 2.0, %v692
      %v701 = vmul.f32 %v677, %v693
      %v702 = vmul.f32 %v678, %v694
      %v703 = vmul.f32 %v679, %v695
      %v704 = vmul.f32 %v680, %v696
      %v705 = vmul.f32 %v681, %v697
      %v706 = vmul.f32 %v682, %v698
      %v707 = vmul.f32 %v683, %v699
      %v708 = vmul.f32 %v684, %v700
      %v709 = vmul.f32 %v638, %v701
      %v710 = vmul.f32 %v640, %v702
      %v711 = vmul.f32 %v642, %v703
      %v712 = vmul.f32 %v644, %v704
      %v713 = vmul.f32 %v646, %v705
      %v714 = vmul.f32 %v648, %v706
      %v715 = vmul.f32 %v650, %v707
      %v716 = vmul.f32 %v652, %v708
      %v718 = vsel %vm252, %v208, 0
      %v721 = vsel %vm252, %v209, 0
      %v724 = vsel %vm252, %v709, 0
      %726 = vmatprep.subr.mxu0 0.0
      %727 = vmatpush1.xpose.msra.mxu0 %v724
      %728 = vmatprep.subr.mxu0 0.0
      %729 = vmatpush1.xpose.msra.mxu0 0.0
      %730 = vmatprep.subr.mxu0 0.0
      %731 = vmatpush1.xpose.msra.mxu0 0.0
      %732 = vmatprep.subr.mxu0 0.0
      %733 = vmatpush1.xpose.msra.mxu0 0.0
      %734 = vmatprep.subr.mxu0 0.0
      %735 = vmatpush1.xpose.msra.mxu0 0.0
      %736 = vmatprep.subr.mxu0 0.0
      %737 = vmatpush1.xpose.msra.mxu0 0.0
      %738 = vmatprep.subr.mxu0 0.0
      %739 = vmatpush1.xpose.msra.mxu0 0.0
      %740 = vmatprep.subr.mxu0 0.0
      %741 = vmatpush1.xpose.msra.mxu0 0.0
      %742 = vmatprep.subr.mxu0 0.0
      %743 = vmatpush1.xpose.msra.mxu0 0.0
      %744 = vmatprep.subr.mxu0 0.0
      %745 = vmatpush1.xpose.msra.mxu0 0.0
      %746 = vmatprep.subr.mxu0 0.0
      %747 = vmatpush1.xpose.msra.mxu0 0.0
      %748 = vmatprep.subr.mxu0 0.0
      %749 = vmatpush1.xpose.msra.mxu0 0.0
      %750 = vmatprep.subr.mxu0 0.0
      %751 = vmatpush1.xpose.msra.mxu0 0.0
      %752 = vmatprep.subr.mxu0 0.0
      %753 = vmatpush1.xpose.msra.mxu0 0.0
      %754 = vmatprep.subr.mxu0 0.0
      %755 = vmatpush1.xpose.msra.mxu0 0.0
      %756 = vmatprep.subr.mxu0 0.0
      %757 = vmatpush1.xpose.msra.mxu0 0.0
      %758 = vmatprep.subr.mxu0 0.0
      %759 = vmatpush1.xpose.msra.mxu0 0.0
      %760 = vmatprep.subr.mxu0 0.0
      %761 = vmatpush1.xpose.msra.mxu0 0.0
      %762 = vmatprep.subr.mxu0 0.0
      %763 = vmatpush1.xpose.msra.mxu0 0.0
      %764 = vmatprep.subr.mxu0 0.0
      %765 = vmatpush1.xpose.msra.mxu0 0.0
      %766 = vmatprep.subr.mxu0 0.0
      %767 = vmatpush1.xpose.msra.mxu0 0.0
      %768 = vmatprep.subr.mxu0 0.0
      %769 = vmatpush1.xpose.msra.mxu0 0.0
      %770 = vmatprep.subr.mxu0 0.0
      %771 = vmatpush1.xpose.msra.mxu0 0.0
      %772 = vmatprep.subr.mxu0 0.0
      %773 = vmatpush1.xpose.msra.mxu0 0.0
      %774 = vmatprep.subr.mxu0 0.0
      %775 = vmatpush1.xpose.msra.mxu0 0.0
      %776 = vmatprep.subr.mxu0 0.0
      %777 = vmatpush1.xpose.msra.mxu0 0.0
      %778 = vmatprep.subr.mxu0 0.0
      %779 = vmatpush1.xpose.msra.mxu0 0.0
      %780 = vmatprep.subr.mxu0 0.0
      %781 = vmatpush1.xpose.msra.mxu0 0.0
      %782 = vmatprep.subr.mxu0 0.0
      %783 = vmatpush1.xpose.msra.mxu0 0.0
      %784 = vmatprep.subr.mxu0 0.0
      %785 = vmatpush1.xpose.msra.mxu0 0.0
      %786 = vmatprep.subr.mxu0 0.0
      %787 = vmatpush1.xpose.msra.mxu0 0.0
      %788 = vmatprep.subr.mxu0 0.0
      %789 = vmatpush1.xpose.msra.mxu0 0.0
      %790 = vmatprep.mubr.f32.mxu0 0.0
      %791 = vmatmul.mubr.f32.gmra.mrb[0].mxu0 %v718
      %v792 = vpop.f32.mrb[0].mxu0
      %v793 = vadd.f32 0.0, %v792
      %v794 = vpop.f32.mrb[0].mxu0
      %795 = vmatprep.mubr.f32.mxu0 0.0
      %796 = vmatmul.mubr.f32.gmra.mrb[0].mxu0 %v721
      %v797 = vpop.f32.mrb[0].mxu0
      %v798 = vadd.f32 0.0, %v797
      %v799 = vpop.f32.mrb[0].mxu0
      %800 = vdwg.mxu0
      %v802 = vsel %vm252, %v210, 0
      %v805 = vsel %vm252, %v211, 0
      %v808 = vsel %vm252, %v710, 0
      %810 = vmatprep.subr.mxu0 0.0
      %811 = vmatpush1.xpose.msra.mxu0 %v808
      %812 = vmatprep.subr.mxu0 0.0
      %813 = vmatpush1.xpose.msra.mxu0 0.0
      %814 = vmatprep.subr.mxu0 0.0
      %815 = vmatpush1.xpose.msra.mxu0 0.0
      %816 = vmatprep.subr.mxu0 0.0
      %817 = vmatpush1.xpose.msra.mxu0 0.0
      %818 = vmatprep.subr.mxu0 0.0
      %819 = vmatpush1.xpose.msra.mxu0 0.0
      %820 = vmatprep.subr.mxu0 0.0
      %821 = vmatpush1.xpose.msra.mxu0 0.0
      %822 = vmatprep.subr.mxu0 0.0
      %823 = vmatpush1.xpose.msra.mxu0 0.0
      %824 = vmatprep.subr.mxu0 0.0
      %825 = vmatpush1.xpose.msra.mxu0 0.0
      %826 = vmatprep.subr.mxu0 0.0
      %827 = vmatpush1.xpose.msra.mxu0 0.0
      %828 = vmatprep.subr.mxu0 0.0
      %829 = vmatpush1.xpose.msra.mxu0 0.0
      %830 = vmatprep.subr.mxu0 0.0
      %831 = vmatpush1.xpose.msra.mxu0 0.0
      %832 = vmatprep.subr.mxu0 0.0
      %833 = vmatpush1.xpose.msra.mxu0 0.0
      %834 = vmatprep.subr.mxu0 0.0
      %835 = vmatpush1.xpose.msra.mxu0 0.0
      %836 = vmatprep.subr.mxu0 0.0
      %837 = vmatpush1.xpose.msra.mxu0 0.0
      %838 = vmatprep.subr.mxu0 0.0
      %839 = vmatpush1.xpose.msra.mxu0 0.0
      %840 = vmatprep.subr.mxu0 0.0
      %841 = vmatpush1.xpose.msra.mxu0 0.0
      %842 = vmatprep.subr.mxu0 0.0
      %843 = vmatpush1.xpose.msra.mxu0 0.0
      %844 = vmatprep.subr.mxu0 0.0
      %845 = vmatpush1.xpose.msra.mxu0 0.0
      %846 = vmatprep.subr.mxu0 0.0
      %847 = vmatpush1.xpose.msra.mxu0 0.0
      %848 = vmatprep.subr.mxu0 0.0
      %849 = vmatpush1.xpose.msra.mxu0 0.0
      %850 = vmatprep.subr.mxu0 0.0
      %851 = vmatpush1.xpose.msra.mxu0 0.0
      %852 = vmatprep.subr.mxu0 0.0
      %853 = vmatpush1.xpose.msra.mxu0 0.0
      %854 = vmatprep.subr.mxu0 0.0
      %855 = vmatpush1.xpose.msra.mxu0 0.0
      %856 = vmatprep.subr.mxu0 0.0
      %857 = vmatpush1.xpose.msra.mxu0 0.0
      %858 = vmatprep.subr.mxu0 0.0
      %859 = vmatpush1.xpose.msra.mxu0 0.0
      %860 = vmatprep.subr.mxu0 0.0
      %861 = vmatpush1.xpose.msra.mxu0 0.0
      %862 = vmatprep.subr.mxu0 0.0
      %863 = vmatpush1.xpose.msra.mxu0 0.0
      %864 = vmatprep.subr.mxu0 0.0
      %865 = vmatpush1.xpose.msra.mxu0 0.0
      %866 = vmatprep.subr.mxu0 0.0
      %867 = vmatpush1.xpose.msra.mxu0 0.0
      %868 = vmatprep.subr.mxu0 0.0
      %869 = vmatpush1.xpose.msra.mxu0 0.0
      %870 = vmatprep.subr.mxu0 0.0
      %871 = vmatpush1.xpose.msra.mxu0 0.0
      %872 = vmatprep.subr.mxu0 0.0
      %873 = vmatpush1.xpose.msra.mxu0 0.0
      %874 = vmatprep.mubr.f32.mxu0 0.0
      %875 = vmatmul.mubr.f32.gmra.mrb[0].mxu0 %v802
      %v876 = vpop.f32.mrb[0].mxu0
      %v877 = vadd.f32 0.0, %v876
      %v878 = vpop.f32.mrb[0].mxu0
      %879 = vmatprep.mubr.f32.mxu0 0.0
      %880 = vmatmul.mubr.f32.gmra.mrb[0].mxu0 %v805
      %v881 = vpop.f32.mrb[0].mxu0
      %v882 = vadd.f32 0.0, %v881
      %v883 = vpop.f32.mrb[0].mxu0
      %884 = vdwg.mxu0
      %v886 = vsel %vm252, %v212, 0
      %v889 = vsel %vm252, %v213, 0
      %v892 = vsel %vm252, %v711, 0
      %894 = vmatprep.subr.mxu0 0.0
      %895 = vmatpush1.xpose.msra.mxu0 %v892
      %896 = vmatprep.subr.mxu0 0.0
      %897 = vmatpush1.xpose.msra.mxu0 0.0
      %898 = vmatprep.subr.mxu0 0.0
      %899 = vmatpush1.xpose.msra.mxu0 0.0
      %900 = vmatprep.subr.mxu0 0.0
      %901 = vmatpush1.xpose.msra.mxu0 0.0
      %902 = vmatprep.subr.mxu0 0.0
      %903 = vmatpush1.xpose.msra.mxu0 0.0
      %904 = vmatprep.subr.mxu0 0.0
      %905 = vmatpush1.xpose.msra.mxu0 0.0
      %906 = vmatprep.subr.mxu0 0.0
      %907 = vmatpush1.xpose.msra.mxu0 0.0
      %908 = vmatprep.subr.mxu0 0.0
      %909 = vmatpush1.xpose.msra.mxu0 0.0
      %910 = vmatprep.subr.mxu0 0.0
      %911 = vmatpush1.xpose.msra.mxu0 0.0
      %912 = vmatprep.subr.mxu0 0.0
      %913 = vmatpush1.xpose.msra.mxu0 0.0
      %914 = vmatprep.subr.mxu0 0.0
      %915 = vmatpush1.xpose.msra.mxu0 0.0
      %916 = vmatprep.subr.mxu0 0.0
      %917 = vmatpush1.xpose.msra.mxu0 0.0
      %918 = vmatprep.subr.mxu0 0.0
      %919 = vmatpush1.xpose.msra.mxu0 0.0
      %920 = vmatprep.subr.mxu0 0.0
      %921 = vmatpush1.xpose.msra.mxu0 0.0
      %922 = vmatprep.subr.mxu0 0.0
      %923 = vmatpush1.xpose.msra.mxu0 0.0
      %924 = vmatprep.subr.mxu0 0.0
      %925 = vmatpush1.xpose.msra.mxu0 0.0
      %926 = vmatprep.subr.mxu0 0.0
      %927 = vmatpush1.xpose.msra.mxu0 0.0
      %928 = vmatprep.subr.mxu0 0.0
      %929 = vmatpush1.xpose.msra.mxu0 0.0
      %930 = vmatprep.subr.mxu0 0.0
      %931 = vmatpush1.xpose.msra.mxu0 0.0
      %932 = vmatprep.subr.mxu0 0.0
      %933 = vmatpush1.xpose.msra.mxu0 0.0
      %934 = vmatprep.subr.mxu0 0.0
      %935 = vmatpush1.xpose.msra.mxu0 0.0
      %936 = vmatprep.subr.mxu0 0.0
      %937 = vmatpush1.xpose.msra.mxu0 0.0
      %938 = vmatprep.subr.mxu0 0.0
      %939 = vmatpush1.xpose.msra.mxu0 0.0
      %940 = vmatprep.subr.mxu0 0.0
      %941 = vmatpush1.xpose.msra.mxu0 0.0
      %942 = vmatprep.subr.mxu0 0.0
      %943 = vmatpush1.xpose.msra.mxu0 0.0
      %944 = vmatprep.subr.mxu0 0.0
      %945 = vmatpush1.xpose.msra.mxu0 0.0
      %946 = vmatprep.subr.mxu0 0.0
      %947 = vmatpush1.xpose.msra.mxu0 0.0
      %948 = vmatprep.subr.mxu0 0.0
      %949 = vmatpush1.xpose.msra.mxu0 0.0
      %950 = vmatprep.subr.mxu0 0.0
      %951 = vmatpush1.xpose.msra.mxu0 0.0
      %952 = vmatprep.subr.mxu0 0.0
      %953 = vmatpush1.xpose.msra.mxu0 0.0
      %954 = vmatprep.subr.mxu0 0.0
      %955 = vmatpush1.xpose.msra.mxu0 0.0
      %956 = vmatprep.subr.mxu0 0.0
      %957 = vmatpush1.xpose.msra.mxu0 0.0
      %958 = vmatprep.mubr.f32.mxu0 0.0
      %959 = vmatmul.mubr.f32.gmra.mrb[0].mxu0 %v886
      %v960 = vpop.f32.mrb[0].mxu0
      %v961 = vadd.f32 0.0, %v960
      %v962 = vpop.f32.mrb[0].mxu0
      %963 = vmatprep.mubr.f32.mxu0 0.0
      %964 = vmatmul.mubr.f32.gmra.mrb[0].mxu0 %v889
      %v965 = vpop.f32.mrb[0].mxu0
      %v966 = vadd.f32 0.0, %v965
      %v967 = vpop.f32.mrb[0].mxu0
      %968 = vdwg.mxu0
      %v970 = vsel %vm252, %v214, 0
      %v973 = vsel %vm252, %v215, 0
      %v976 = vsel %vm252, %v712, 0
      %978 = vmatprep.subr.mxu0 0.0
      %979 = vmatpush1.xpose.msra.mxu0 %v976
      %980 = vmatprep.subr.mxu0 0.0
      %981 = vmatpush1.xpose.msra.mxu0 0.0
      %982 = vmatprep.subr.mxu0 0.0
      %983 = vmatpush1.xpose.msra.mxu0 0.0
      %984 = vmatprep.subr.mxu0 0.0
      %985 = vmatpush1.xpose.msra.mxu0 0.0
      %986 = vmatprep.subr.mxu0 0.0
      %987 = vmatpush1.xpose.msra.mxu0 0.0
      %988 = vmatprep.subr.mxu0 0.0
      %989 = vmatpush1.xpose.msra.mxu0 0.0
      %990 = vmatprep.subr.mxu0 0.0
      %991 = vmatpush1.xpose.msra.mxu0 0.0
      %992 = vmatprep.subr.mxu0 0.0
      %993 = vmatpush1.xpose.msra.mxu0 0.0
      %994 = vmatprep.subr.mxu0 0.0
      %995 = vmatpush1.xpose.msra.mxu0 0.0
      %996 = vmatprep.subr.mxu0 0.0
      %997 = vmatpush1.xpose.msra.mxu0 0.0
      %998 = vmatprep.subr.mxu0 0.0
      %999 = vmatpush1.xpose.msra.mxu0 0.0
      %1000 = vmatprep.subr.mxu0 0.0
      %1001 = vmatpush1.xpose.msra.mxu0 0.0
      %1002 = vmatprep.subr.mxu0 0.0
      %1003 = vmatpush1.xpose.msra.mxu0 0.0
      %1004 = vmatprep.subr.mxu0 0.0
      %1005 = vmatpush1.xpose.msra.mxu0 0.0
      %1006 = vmatprep.subr.mxu0 0.0
      %1007 = vmatpush1.xpose.msra.mxu0 0.0
      %1008 = vmatprep.subr.mxu0 0.0
      %1009 = vmatpush1.xpose.msra.mxu0 0.0
      %1010 = vmatprep.subr.mxu0 0.0
      %1011 = vmatpush1.xpose.msra.mxu0 0.0
      %1012 = vmatprep.subr.mxu0 0.0
      %1013 = vmatpush1.xpose.msra.mxu0 0.0
      %1014 = vmatprep.subr.mxu0 0.0
      %1015 = vmatpush1.xpose.msra.mxu0 0.0
      %1016 = vmatprep.subr.mxu0 0.0
      %1017 = vmatpush1.xpose.msra.mxu0 0.0
      %1018 = vmatprep.subr.mxu0 0.0
      %1019 = vmatpush1.xpose.msra.mxu0 0.0
      %1020 = vmatprep.subr.mxu0 0.0
      %1021 = vmatpush1.xpose.msra.mxu0 0.0
      %1022 = vmatprep.subr.mxu0 0.0
      %1023 = vmatpush1.xpose.msra.mxu0 0.0
      %1024 = vmatprep.subr.mxu0 0.0
      %1025 = vmatpush1.xpose.msra.mxu0 0.0
      %1026 = vmatprep.subr.mxu0 0.0
      %1027 = vmatpush1.xpose.msra.mxu0 0.0
      %1028 = vmatprep.subr.mxu0 0.0
      %1029 = vmatpush1.xpose.msra.mxu0 0.0
      %1030 = vmatprep.subr.mxu0 0.0
      %1031 = vmatpush1.xpose.msra.mxu0 0.0
      %1032 = vmatprep.subr.mxu0 0.0
      %1033 = vmatpush1.xpose.msra.mxu0 0.0
      %1034 = vmatprep.subr.mxu0 0.0
      %1035 = vmatpush1.xpose.msra.mxu0 0.0
      %1036 = vmatprep.subr.mxu0 0.0
      %1037 = vmatpush1.xpose.msra.mxu0 0.0
      %1038 = vmatprep.subr.mxu0 0.0
      %1039 = vmatpush1.xpose.msra.mxu0 0.0
      %1040 = vmatprep.subr.mxu0 0.0
      %1041 = vmatpush1.xpose.msra.mxu0 0.0
      %1042 = vmatprep.mubr.f32.mxu0 0.0
      %1043 = vmatmul.mubr.f32.gmra.mrb[0].mxu0 %v970
      %v1044 = vpop.f32.mrb[0].mxu0
      %v1045 = vadd.f32 0.0, %v1044
      %v1046 = vpop.f32.mrb[0].mxu0
      %1047 = vmatprep.mubr.f32.mxu0 0.0
      %1048 = vmatmul.mubr.f32.gmra.mrb[0].mxu0 %v973
      %v1049 = vpop.f32.mrb[0].mxu0
      %v1050 = vadd.f32 0.0, %v1049
      %v1051 = vpop.f32.mrb[0].mxu0
      %1052 = vdwg.mxu0
      %v1054 = vsel %vm252, %v216, 0
      %v1057 = vsel %vm252, %v217, 0
      %v1060 = vsel %vm252, %v713, 0
      %1062 = vmatprep.subr.mxu0 0.0
      %1063 = vmatpush1.xpose.msra.mxu0 %v1060
      %1064 = vmatprep.subr.mxu0 0.0
      %1065 = vmatpush1.xpose.msra.mxu0 0.0
      %1066 = vmatprep.subr.mxu0 0.0
      %1067 = vmatpush1.xpose.msra.mxu0 0.0
      %1068 = vmatprep.subr.mxu0 0.0
      %1069 = vmatpush1.xpose.msra.mxu0 0.0
      %1070 = vmatprep.subr.mxu0 0.0
      %1071 = vmatpush1.xpose.msra.mxu0 0.0
      %1072 = vmatprep.subr.mxu0 0.0
      %1073 = vmatpush1.xpose.msra.mxu0 0.0
      %1074 = vmatprep.subr.mxu0 0.0
      %1075 = vmatpush1.xpose.msra.mxu0 0.0
      %1076 = vmatprep.subr.mxu0 0.0
      %1077 = vmatpush1.xpose.msra.mxu0 0.0
      %1078 = vmatprep.subr.mxu0 0.0
      %1079 = vmatpush1.xpose.msra.mxu0 0.0
      %1080 = vmatprep.subr.mxu0 0.0
      %1081 = vmatpush1.xpose.msra.mxu0 0.0
      %1082 = vmatprep.subr.mxu0 0.0
      %1083 = vmatpush1.xpose.msra.mxu0 0.0
      %1084 = vmatprep.subr.mxu0 0.0
      %1085 = vmatpush1.xpose.msra.mxu0 0.0
      %1086 = vmatprep.subr.mxu0 0.0
      %1087 = vmatpush1.xpose.msra.mxu0 0.0
      %1088 = vmatprep.subr.mxu0 0.0
      %1089 = vmatpush1.xpose.msra.mxu0 0.0
      %1090 = vmatprep.subr.mxu0 0.0
      %1091 = vmatpush1.xpose.msra.mxu0 0.0
      %1092 = vmatprep.subr.mxu0 0.0
      %1093 = vmatpush1.xpose.msra.mxu0 0.0
      %1094 = vmatprep.subr.mxu0 0.0
      %1095 = vmatpush1.xpose.msra.mxu0 0.0
      %1096 = vmatprep.subr.mxu0 0.0
      %1097 = vmatpush1.xpose.msra.mxu0 0.0
      %1098 = vmatprep.subr.mxu0 0.0
      %1099 = vmatpush1.xpose.msra.mxu0 0.0
      %1100 = vmatprep.subr.mxu0 0.0
      %1101 = vmatpush1.xpose.msra.mxu0 0.0
      %1102 = vmatprep.subr.mxu0 0.0
      %1103 = vmatpush1.xpose.msra.mxu0 0.0
      %1104 = vmatprep.subr.mxu0 0.0
      %1105 = vmatpush1.xpose.msra.mxu0 0.0
      %1106 = vmatprep.subr.mxu0 0.0
      %1107 = vmatpush1.xpose.msra.mxu0 0.0
      %1108 = vmatprep.subr.mxu0 0.0
      %1109 = vmatpush1.xpose.msra.mxu0 0.0
      %1110 = vmatprep.subr.mxu0 0.0
      %1111 = vmatpush1.xpose.msra.mxu0 0.0
      %1112 = vmatprep.subr.mxu0 0.0
      %1113 = vmatpush1.xpose.msra.mxu0 0.0
      %1114 = vmatprep.subr.mxu0 0.0
      %1115 = vmatpush1.xpose.msra.mxu0 0.0
      %1116 = vmatprep.subr.mxu0 0.0
      %1117 = vmatpush1.xpose.msra.mxu0 0.0
      %1118 = vmatprep.subr.mxu0 0.0
      %1119 = vmatpush1.xpose.msra.mxu0 0.0
      %1120 = vmatprep.subr.mxu0 0.0
      %1121 = vmatpush1.xpose.msra.mxu0 0.0
      %1122 = vmatprep.subr.mxu0 0.0
      %1123 = vmatpush1.xpose.msra.mxu0 0.0
      %1124 = vmatprep.subr.mxu0 0.0
      %1125 = vmatpush1.xpose.msra.mxu0 0.0
      %1126 = vmatprep.mubr.f32.mxu0 0.0
      %1127 = vmatmul.mubr.f32.gmra.mrb[0].mxu0 %v1054
      %v1128 = vpop.f32.mrb[0].mxu0
      %v1129 = vadd.f32 0.0, %v1128
      %v1130 = vpop.f32.mrb[0].mxu0
      %1131 = vmatprep.mubr.f32.mxu0 0.0
      %1132 = vmatmul.mubr.f32.gmra.mrb[0].mxu0 %v1057
      %v1133 = vpop.f32.mrb[0].mxu0
      %v1134 = vadd.f32 0.0, %v1133
      %v1135 = vpop.f32.mrb[0].mxu0
      %1136 = vdwg.mxu0
      %v1138 = vsel %vm252, %v218, 0
      %v1141 = vsel %vm252, %v219, 0
      %v1144 = vsel %vm252, %v714, 0
      %1146 = vmatprep.subr.mxu0 0.0
      %1147 = vmatpush1.xpose.msra.mxu0 %v1144
      %1148 = vmatprep.subr.mxu0 0.0
      %1149 = vmatpush1.xpose.msra.mxu0 0.0
      %1150 = vmatprep.subr.mxu0 0.0
      %1151 = vmatpush1.xpose.msra.mxu0 0.0
      %1152 = vmatprep.subr.mxu0 0.0
      %1153 = vmatpush1.xpose.msra.mxu0 0.0
      %1154 = vmatprep.subr.mxu0 0.0
      %1155 = vmatpush1.xpose.msra.mxu0 0.0
      %1156 = vmatprep.subr.mxu0 0.0
      %1157 = vmatpush1.xpose.msra.mxu0 0.0
      %1158 = vmatprep.subr.mxu0 0.0
      %1159 = vmatpush1.xpose.msra.mxu0 0.0
      %1160 = vmatprep.subr.mxu0 0.0
      %1161 = vmatpush1.xpose.msra.mxu0 0.0
      %1162 = vmatprep.subr.mxu0 0.0
      %1163 = vmatpush1.xpose.msra.mxu0 0.0
      %1164 = vmatprep.subr.mxu0 0.0
      %1165 = vmatpush1.xpose.msra.mxu0 0.0
      %1166 = vmatprep.subr.mxu0 0.0
      %1167 = vmatpush1.xpose.msra.mxu0 0.0
      %1168 = vmatprep.subr.mxu0 0.0
      %1169 = vmatpush1.xpose.msra.mxu0 0.0
      %1170 = vmatprep.subr.mxu0 0.0
      %1171 = vmatpush1.xpose.msra.mxu0 0.0
      %1172 = vmatprep.subr.mxu0 0.0
      %1173 = vmatpush1.xpose.msra.mxu0 0.0
      %1174 = vmatprep.subr.mxu0 0.0
      %1175 = vmatpush1.xpose.msra.mxu0 0.0
      %1176 = vmatprep.subr.mxu0 0.0
      %1177 = vmatpush1.xpose.msra.mxu0 0.0
      %1178 = vmatprep.subr.mxu0 0.0
      %1179 = vmatpush1.xpose.msra.mxu0 0.0
      %1180 = vmatprep.subr.mxu0 0.0
      %1181 = vmatpush1.xpose.msra.mxu0 0.0
      %1182 = vmatprep.subr.mxu0 0.0
      %1183 = vmatpush1.xpose.msra.mxu0 0.0
      %1184 = vmatprep.subr.mxu0 0.0
      %1185 = vmatpush1.xpose.msra.mxu0 0.0
      %1186 = vmatprep.subr.mxu0 0.0
      %1187 = vmatpush1.xpose.msra.mxu0 0.0
      %1188 = vmatprep.subr.mxu0 0.0
      %1189 = vmatpush1.xpose.msra.mxu0 0.0
      %1190 = vmatprep.subr.mxu0 0.0
      %1191 = vmatpush1.xpose.msra.mxu0 0.0
      %1192 = vmatprep.subr.mxu0 0.0
      %1193 = vmatpush1.xpose.msra.mxu0 0.0
      %1194 = vmatprep.subr.mxu0 0.0
      %1195 = vmatpush1.xpose.msra.mxu0 0.0
      %1196 = vmatprep.subr.mxu0 0.0
      %1197 = vmatpush1.xpose.msra.mxu0 0.0
      %1198 = vmatprep.subr.mxu0 0.0
      %1199 = vmatpush1.xpose.msra.mxu0 0.0
      %1200 = vmatprep.subr.mxu0 0.0
      %1201 = vmatpush1.xpose.msra.mxu0 0.0
      %1202 = vmatprep.subr.mxu0 0.0
      %1203 = vmatpush1.xpose.msra.mxu0 0.0
      %1204 = vmatprep.subr.mxu0 0.0
      %1205 = vmatpush1.xpose.msra.mxu0 0.0
      %1206 = vmatprep.subr.mxu0 0.0
      %1207 = vmatpush1.xpose.msra.mxu0 0.0
      %1208 = vmatprep.subr.mxu0 0.0
      %1209 = vmatpush1.xpose.msra.mxu0 0.0
      %1210 = vmatprep.mubr.f32.mxu0 0.0
      %1211 = vmatmul.mubr.f32.gmra.mrb[0].mxu0 %v1138
      %v1212 = vpop.f32.mrb[0].mxu0
      %v1213 = vadd.f32 0.0, %v1212
      %v1214 = vpop.f32.mrb[0].mxu0
      %1215 = vmatprep.mubr.f32.mxu0 0.0
      %1216 = vmatmul.mubr.f32.gmra.mrb[0].mxu0 %v1141
      %v1217 = vpop.f32.mrb[0].mxu0
      %v1218 = vadd.f32 0.0, %v1217
      %v1219 = vpop.f32.mrb[0].mxu0
      %1220 = vdwg.mxu0
      %v1222 = vsel %vm252, %v220, 0
      %v1225 = vsel %vm252, %v221, 0
      %v1228 = vsel %vm252, %v715, 0
      %1230 = vmatprep.subr.mxu0 0.0
      %1231 = vmatpush1.xpose.msra.mxu0 %v1228
      %1232 = vmatprep.subr.mxu0 0.0
      %1233 = vmatpush1.xpose.msra.mxu0 0.0
      %1234 = vmatprep.subr.mxu0 0.0
      %1235 = vmatpush1.xpose.msra.mxu0 0.0
      %1236 = vmatprep.subr.mxu0 0.0
      %1237 = vmatpush1.xpose.msra.mxu0 0.0
      %1238 = vmatprep.subr.mxu0 0.0
      %1239 = vmatpush1.xpose.msra.mxu0 0.0
      %1240 = vmatprep.subr.mxu0 0.0
      %1241 = vmatpush1.xpose.msra.mxu0 0.0
      %1242 = vmatprep.subr.mxu0 0.0
      %1243 = vmatpush1.xpose.msra.mxu0 0.0
      %1244 = vmatprep.subr.mxu0 0.0
      %1245 = vmatpush1.xpose.msra.mxu0 0.0
      %1246 = vmatprep.subr.mxu0 0.0
      %1247 = vmatpush1.xpose.msra.mxu0 0.0
      %1248 = vmatprep.subr.mxu0 0.0
      %1249 = vmatpush1.xpose.msra.mxu0 0.0
      %1250 = vmatprep.subr.mxu0 0.0
      %1251 = vmatpush1.xpose.msra.mxu0 0.0
      %1252 = vmatprep.subr.mxu0 0.0
      %1253 = vmatpush1.xpose.msra.mxu0 0.0
      %1254 = vmatprep.subr.mxu0 0.0
      %1255 = vmatpush1.xpose.msra.mxu0 0.0
      %1256 = vmatprep.subr.mxu0 0.0
      %1257 = vmatpush1.xpose.msra.mxu0 0.0
      %1258 = vmatprep.subr.mxu0 0.0
      %1259 = vmatpush1.xpose.msra.mxu0 0.0
      %1260 = vmatprep.subr.mxu0 0.0
      %1261 = vmatpush1.xpose.msra.mxu0 0.0
      %1262 = vmatprep.subr.mxu0 0.0
      %1263 = vmatpush1.xpose.msra.mxu0 0.0
      %1264 = vmatprep.subr.mxu0 0.0
      %1265 = vmatpush1.xpose.msra.mxu0 0.0
      %1266 = vmatprep.subr.mxu0 0.0
      %1267 = vmatpush1.xpose.msra.mxu0 0.0
      %1268 = vmatprep.subr.mxu0 0.0
      %1269 = vmatpush1.xpose.msra.mxu0 0.0
      %1270 = vmatprep.subr.mxu0 0.0
      %1271 = vmatpush1.xpose.msra.mxu0 0.0
      %1272 = vmatprep.subr.mxu0 0.0
      %1273 = vmatpush1.xpose.msra.mxu0 0.0
      %1274 = vmatprep.subr.mxu0 0.0
      %1275 = vmatpush1.xpose.msra.mxu0 0.0
      %1276 = vmatprep.subr.mxu0 0.0
      %1277 = vmatpush1.xpose.msra.mxu0 0.0
      %1278 = vmatprep.subr.mxu0 0.0
      %1279 = vmatpush1.xpose.msra.mxu0 0.0
      %1280 = vmatprep.subr.mxu0 0.0
      %1281 = vmatpush1.xpose.msra.mxu0 0.0
      %1282 = vmatprep.subr.mxu0 0.0
      %1283 = vmatpush1.xpose.msra.mxu0 0.0
      %1284 = vmatprep.subr.mxu0 0.0
      %1285 = vmatpush1.xpose.msra.mxu0 0.0
      %1286 = vmatprep.subr.mxu0 0.0
      %1287 = vmatpush1.xpose.msra.mxu0 0.0
      %1288 = vmatprep.subr.mxu0 0.0
      %1289 = vmatpush1.xpose.msra.mxu0 0.0
      %1290 = vmatprep.subr.mxu0 0.0
      %1291 = vmatpush1.xpose.msra.mxu0 0.0
      %1292 = vmatprep.subr.mxu0 0.0
      %1293 = vmatpush1.xpose.msra.mxu0 0.0
      %1294 = vmatprep.mubr.f32.mxu0 0.0
      %1295 = vmatmul.mubr.f32.gmra.mrb[0].mxu0 %v1222
      %v1296 = vpop.f32.mrb[0].mxu0
      %v1297 = vadd.f32 0.0, %v1296
      %v1298 = vpop.f32.mrb[0].mxu0
      %1299 = vmatprep.mubr.f32.mxu0 0.0
      %1300 = vmatmul.mubr.f32.gmra.mrb[0].mxu0 %v1225
      %v1301 = vpop.f32.mrb[0].mxu0
      %v1302 = vadd.f32 0.0, %v1301
      %v1303 = vpop.f32.mrb[0].mxu0
      %1304 = vdwg.mxu0
      %v1306 = vsel %vm252, %v222, 0
      %v1309 = vsel %vm252, %v223, 0
      %v1312 = vsel %vm252, %v716, 0
      %1314 = vmatprep.subr.mxu0 0.0
      %1315 = vmatpush1.xpose.msra.mxu0 %v1312
      %1316 = vmatprep.subr.mxu0 0.0
      %1317 = vmatpush1.xpose.msra.mxu0 0.0
      %1318 = vmatprep.subr.mxu0 0.0
      %1319 = vmatpush1.xpose.msra.mxu0 0.0
      %1320 = vmatprep.subr.mxu0 0.0
      %1321 = vmatpush1.xpose.msra.mxu0 0.0
      %1322 = vmatprep.subr.mxu0 0.0
      %1323 = vmatpush1.xpose.msra.mxu0 0.0
      %1324 = vmatprep.subr.mxu0 0.0
      %1325 = vmatpush1.xpose.msra.mxu0 0.0
      %1326 = vmatprep.subr.mxu0 0.0
      %1327 = vmatpush1.xpose.msra.mxu0 0.0
      %1328 = vmatprep.subr.mxu0 0.0
      %1329 = vmatpush1.xpose.msra.mxu0 0.0
      %1330 = vmatprep.subr.mxu0 0.0
      %1331 = vmatpush1.xpose.msra.mxu0 0.0
      %1332 = vmatprep.subr.mxu0 0.0
      %1333 = vmatpush1.xpose.msra.mxu0 0.0
      %1334 = vmatprep.subr.mxu0 0.0
      %1335 = vmatpush1.xpose.msra.mxu0 0.0
      %1336 = vmatprep.subr.mxu0 0.0
      %1337 = vmatpush1.xpose.msra.mxu0 0.0
      %1338 = vmatprep.subr.mxu0 0.0
      %1339 = vmatpush1.xpose.msra.mxu0 0.0
      %1340 = vmatprep.subr.mxu0 0.0
      %1341 = vmatpush1.xpose.msra.mxu0 0.0
      %1342 = vmatprep.subr.mxu0 0.0
      %1343 = vmatpush1.xpose.msra.mxu0 0.0
      %1344 = vmatprep.subr.mxu0 0.0
      %1345 = vmatpush1.xpose.msra.mxu0 0.0
      %1346 = vmatprep.subr.mxu0 0.0
      %1347 = vmatpush1.xpose.msra.mxu0 0.0
      %1348 = vmatprep.subr.mxu0 0.0
      %1349 = vmatpush1.xpose.msra.mxu0 0.0
      %1350 = vmatprep.subr.mxu0 0.0
      %1351 = vmatpush1.xpose.msra.mxu0 0.0
      %1352 = vmatprep.subr.mxu0 0.0
      %1353 = vmatpush1.xpose.msra.mxu0 0.0
      %1354 = vmatprep.subr.mxu0 0.0
      %1355 = vmatpush1.xpose.msra.mxu0 0.0
      %1356 = vmatprep.subr.mxu0 0.0
      %1357 = vmatpush1.xpose.msra.mxu0 0.0
      %1358 = vmatprep.subr.mxu0 0.0
      %1359 = vmatpush1.xpose.msra.mxu0 0.0
      %1360 = vmatprep.subr.mxu0 0.0
      %1361 = vmatpush1.xpose.msra.mxu0 0.0
      %1362 = vmatprep.subr.mxu0 0.0
      %1363 = vmatpush1.xpose.msra.mxu0 0.0
      %1364 = vmatprep.subr.mxu0 0.0
      %1365 = vmatpush1.xpose.msra.mxu0 0.0
      %1366 = vmatprep.subr.mxu0 0.0
      %1367 = vmatpush1.xpose.msra.mxu0 0.0
      %1368 = vmatprep.subr.mxu0 0.0
      %1369 = vmatpush1.xpose.msra.mxu0 0.0
      %1370 = vmatprep.subr.mxu0 0.0
      %1371 = vmatpush1.xpose.msra.mxu0 0.0
      %1372 = vmatprep.subr.mxu0 0.0
      %1373 = vmatpush1.xpose.msra.mxu0 0.0
      %1374 = vmatprep.subr.mxu0 0.0
      %1375 = vmatpush1.xpose.msra.mxu0 0.0
      %1376 = vmatprep.subr.mxu0 0.0
      %1377 = vmatpush1.xpose.msra.mxu0 0.0
      %1378 = vmatprep.mubr.f32.mxu0 0.0
      %1379 = vmatmul.mubr.f32.gmra.mrb[0].mxu0 %v1306
      %v1380 = vpop.f32.mrb[0].mxu0
      %v1381 = vadd.f32 0.0, %v1380
      %v1382 = vpop.f32.mrb[0].mxu0
      %1383 = vmatprep.mubr.f32.mxu0 0.0
      %1384 = vmatmul.mubr.f32.gmra.mrb[0].mxu0 %v1309
      %v1385 = vpop.f32.mrb[0].mxu0
      %v1386 = vadd.f32 0.0, %v1385
      %v1387 = vpop.f32.mrb[0].mxu0
      %1388 = vdwg.mxu0
      %v1389 = vxor.u32 %v793, 2147483648
      %v1390 = vxor.u32 %v798, 2147483648
      %v1391 = vxor.u32 %v877, 2147483648
      %v1392 = vxor.u32 %v882, 2147483648
      %v1393 = vxor.u32 %v961, 2147483648
      %v1394 = vxor.u32 %v966, 2147483648
      %v1395 = vxor.u32 %v1045, 2147483648
      %v1396 = vxor.u32 %v1050, 2147483648
      %v1397 = vxor.u32 %v1129, 2147483648
      %v1398 = vxor.u32 %v1134, 2147483648
      %v1399 = vxor.u32 %v1213, 2147483648
      %v1400 = vxor.u32 %v1218, 2147483648
      %v1401 = vxor.u32 %v1297, 2147483648
      %v1402 = vxor.u32 %v1302, 2147483648
      %v1403 = vxor.u32 %v1381, 2147483648
      %v1404 = vxor.u32 %v1386, 2147483648
      %v1405 = vmul.f32 %v1389, 1.442695
      %v1406 = vpow.pop %v1405
      %v1407 = vmul.f32 %v1390, 1.442695
      %v1408 = vpow.pop %v1407
      %v1409 = vmul.f32 %v1391, 1.442695
      %v1410 = vpow.pop %v1409
      %v1411 = vmul.f32 %v1392, 1.442695
      %v1412 = vpow.pop %v1411
      %v1413 = vmul.f32 %v1393, 1.442695
      %v1414 = vpow.pop %v1413
      %v1415 = vmul.f32 %v1394, 1.442695
      %v1416 = vpow.pop %v1415
      %v1417 = vmul.f32 %v1395, 1.442695
      %v1418 = vpow.pop %v1417
      %v1419 = vmul.f32 %v1396, 1.442695
      %v1420 = vpow.pop %v1419
      %v1421 = vmul.f32 %v1397, 1.442695
      %v1422 = vpow.pop %v1421
      %v1423 = vmul.f32 %v1398, 1.442695
      %v1424 = vpow.pop %v1423
      %v1425 = vmul.f32 %v1399, 1.442695
      %v1426 = vpow.pop %v1425
      %v1427 = vmul.f32 %v1400, 1.442695
      %v1428 = vpow.pop %v1427
      %v1429 = vmul.f32 %v1401, 1.442695
      %v1430 = vpow.pop %v1429
      %v1431 = vmul.f32 %v1402, 1.442695
      %v1432 = vpow.pop %v1431
      %v1433 = vmul.f32 %v1403, 1.442695
      %v1434 = vpow.pop %v1433
      %v1435 = vmul.f32 %v1404, 1.442695
      %v1436 = vpow.pop %v1435
      %v1437 = vadd.f32 %v1406, 1.0
      %v1438 = vadd.f32 %v1408, 1.0
      %v1439 = vadd.f32 %v1410, 1.0
      %v1440 = vadd.f32 %v1412, 1.0
      %v1441 = vadd.f32 %v1414, 1.0
      %v1442 = vadd.f32 %v1416, 1.0
      %v1443 = vadd.f32 %v1418, 1.0
      %v1444 = vadd.f32 %v1420, 1.0
      %v1445 = vadd.f32 %v1422, 1.0
      %v1446 = vadd.f32 %v1424, 1.0
      %v1447 = vadd.f32 %v1426, 1.0
      %v1448 = vadd.f32 %v1428, 1.0
      %v1449 = vadd.f32 %v1430, 1.0
      %v1450 = vadd.f32 %v1432, 1.0
      %v1451 = vadd.f32 %v1434, 1.0
      %v1452 = vadd.f32 %v1436, 1.0
      %v1453 = vrcp.pop %v1437
      %v1454 = vmul.f32 1.0, %v1453
      %v1455 = vrcp.pop %v1438
      %v1456 = vmul.f32 1.0, %v1455
      %v1457 = vrcp.pop %v1439
      %v1458 = vmul.f32 1.0, %v1457
      %v1459 = vrcp.pop %v1440
      %v1460 = vmul.f32 1.0, %v1459
      %v1461 = vrcp.pop %v1441
      %v1462 = vmul.f32 1.0, %v1461
      %v1463 = vrcp.pop %v1442
      %v1464 = vmul.f32 1.0, %v1463
      %v1465 = vrcp.pop %v1443
      %v1466 = vmul.f32 1.0, %v1465
      %v1467 = vrcp.pop %v1444
      %v1468 = vmul.f32 1.0, %v1467
      %v1469 = vrcp.pop %v1445
      %v1470 = vmul.f32 1.0, %v1469
      %v1471 = vrcp.pop %v1446
      %v1472 = vmul.f32 1.0, %v1471
      %v1473 = vrcp.pop %v1447
      %v1474 = vmul.f32 1.0, %v1473
      %v1475 = vrcp.pop %v1448
      %v1476 = vmul.f32 1.0, %v1475
      %v1477 = vrcp.pop %v1449
      %v1478 = vmul.f32 1.0, %v1477
      %v1479 = vrcp.pop %v1450
      %v1480 = vmul.f32 1.0, %v1479
      %v1481 = vrcp.pop %v1451
      %v1482 = vmul.f32 1.0, %v1481
      %v1483 = vrcp.pop %v1452
      %v1484 = vmul.f32 1.0, %v1483
      %1485 = vst.msk [vmem:[%s206] sm:$0xff] %vm252, %v1454
      %1486 = vst.msk [vmem:[%s206 + $0x8] sm:$0xff] %vm252, %v1456
      %1487 = vst.msk [vmem:[%s206 + $0x10] sm:$0xff] %vm252, %v1458
      %1488 = vst.msk [vmem:[%s206 + $0x18] sm:$0xff] %vm252, %v1460
      %1489 = vst.msk [vmem:[%s206 + $0x20] sm:$0xff] %vm252, %v1462
      %1490 = vst.msk [vmem:[%s206 + $0x28] sm:$0xff] %vm252, %v1464
      %1491 = vst.msk [vmem:[%s206 + $0x30] sm:$0xff] %vm252, %v1466
      %1492 = vst.msk [vmem:[%s206 + $0x38] sm:$0xff] %vm252, %v1468
      %1493 = vst.msk [vmem:[%s206 + $0x40] sm:$0xff] %vm252, %v1470
      %1494 = vst.msk [vmem:[%s206 + $0x48] sm:$0xff] %vm252, %v1472
      %1495 = vst.msk [vmem:[%s206 + $0x50] sm:$0xff] %vm252, %v1474
      %1496 = vst.msk [vmem:[%s206 + $0x58] sm:$0xff] %vm252, %v1476
      %1497 = vst.msk [vmem:[%s206 + $0x60] sm:$0xff] %vm252, %v1478
      %1498 = vst.msk [vmem:[%s206 + $0x68] sm:$0xff] %vm252, %v1480
      %1499 = vst.msk [vmem:[%s206 + $0x70] sm:$0xff] %vm252, %v1482
      %1500 = vst.msk [vmem:[%s206 + $0x78] sm:$0xff] %vm252, %v1484
      %s1501 = smul.u32 8, %s17
      %p1502 = scmp.lt.s32.totalorder %s1501, 15
      %s1503 = scalar_select %p1502, %s1501, 15
      %s1504 = smul.addr %s1503, 2
      %s1505 = smul.addr %s1504, 8
      %s1506 = scalar_lea.vmem %s4, %s1505
      // Predicated region
      $region37: #{feature_attention_forward.1} parent=35 // pred_check
        %p1507 = pneg %p124
      $region38: #{feature_attention_forward.1} parent=35 // pred_check_branch
        %1509 = sbr.rel (%p1507) target = $region40
      $region39: #{feature_attention_forward.1} parent=35 // pred_region
        %s1510 = smul.u32 8, %s17
      $region40: #{feature_attention_forward.1} parent=35 // pred_fallthru
        _
    $region36: #{feature_attention_forward.1} parent=5 // pred_fallthru
      _
    %p1511 = scmp.le.s32.totalorder 2, %s12
    // Predicated region
    $region41: #{feature_attention_forward.1} parent=5 // pred_check
      %p1512 = pneg %p1511
    $region42: #{feature_attention_forward.1} parent=5 // pred_check_branch
      %1514 = sbr.rel (%p1512) target = $region44
    $region43: #{feature_attention_forward.1} parent=5 // pred_region
      %s1515 = ssub.s32 %s12, 2
      // Predicated region
      $region45: #{feature_attention_forward.1} parent=43 // pred_check
        %p1516 = pneg %p130
      $region46: #{feature_attention_forward.1} parent=43 // pred_check_branch
        %1518 = sbr.rel (%p1516) target = $region48
      $region47: #{feature_attention_forward.1} parent=43 // pred_region
        %s1519 = smul.u32 8, %s18
        %p1520 = scmp.lt.s32.totalorder %s1519, 15
        %s1521 = scalar_select %p1520, %s1519, 15
        %s1522 = smul.addr %s1521, 2
        %s1523 = smul.addr %s1522, 8
        %s1524 = scalar_lea.vmem %s4, %s1523
      $region48: #{feature_attention_forward.1} parent=43 // pred_fallthru
        _
    $region44: #{feature_attention_forward.1} parent=5 // pred_fallthru
      _
  $region6: #{feature_attention_forward.1} parent=0 // loop_footer
    %s16 = sadd.s32 1, %s12
  $region7: #{feature_attention_forward.1} parent=0 // loop_footer_branch
    %11 = sbr.rel target = $region3
  $region8: #{feature_attention_forward.1} parent=0 // loop_exit
    _

</llo_original>
